<compile_context>
chip_gen: v6e
topology: v6e:2x2x1
jax: 0.10.0
libtpu: 0.0.40
codegen_flags: <defaults>
</compile_context>

<pallas_src>
import functools

import jax
import jax.numpy as jnp
from jax.experimental import pallas as pl
from jax.experimental.pallas import tpu as pltpu


def _conv3x3_kernel(x_ref, w_ref, b_ref, o_ref, *, strip_h, W, apply_relu, fold_dx):
    """One (batch, row-strip) tile of a 3x3 'same' conv (+ bias, optional ReLU).

    x_ref: (1, strip_h + 2, W + 2, Cin)  zero-padded input window (f32)
    w_ref: (3, 3 * Cin, Cout)            weights, dy-major, (dx, cin) folded (bf16)
    b_ref: (1, Cout)                     bias (f32)
    o_ref: (1, strip_h, W, Cout)         output tile (f32)
    """
    cin = x_ref.shape[-1]
    cout = o_ref.shape[-1]
    x = x_ref[0]                                       # (strip_h + 2, W + 2, Cin)
    acc = jnp.zeros((strip_h * W, cout), jnp.float32)
    for dy in range(3):
        rows = x[dy:dy + strip_h]                      # (strip_h, W + 2, Cin)
        if fold_dx:
            # Fold the three width taps into K: one (M, 3*Cin) x (3*Cin, Cout)
            # MXU push per dy instead of three small ones.
            patch = jnp.concatenate(
                [rows[:, dx:dx + W, :] for dx in range(3)], axis=-1)
            patch = patch.reshape(strip_h * W, 3 * cin).astype(jnp.bfloat16)
            acc = acc + jnp.dot(patch, w_ref[dy],
                                preferred_element_type=jnp.float32)
        else:
            for dx in range(3):
                patch = rows[:, dx:dx + W, :].reshape(strip_h * W, cin)
                patch = patch.astype(jnp.bfloat16)
                w_tap = w_ref[dy, dx * cin:(dx + 1) * cin, :]
                acc = acc + jnp.dot(patch, w_tap,
                                    preferred_element_type=jnp.float32)
    acc = acc + b_ref[0][None, :]
    if apply_relu:
        acc = jnp.maximum(acc, 0.0)
    o_ref[0] = acc.reshape(strip_h, W, cout).astype(o_ref.dtype)


def _conv3x3_call(xp, wf, b2, *, N, H, W, Cin, Cout, strip_h, apply_relu, fold_dx):
    num_strips = H // strip_h
    if num_strips == 1:
        # Whole image in one block: plain blocked indexing.
        x_spec = pl.BlockSpec((1, H + 2, W + 2, Cin), lambda n, i: (n, 0, 0, 0))
    else:
        # Overlapping row strips: element-offset indexing on H so strip i sees
        # padded rows [i*strip_h, i*strip_h + strip_h + 2).
        x_spec = pl.BlockSpec((1, pl.Element(strip_h + 2), W + 2, Cin),
                              lambda n, i: (n, i * strip_h, 0, 0))
    kernel = functools.partial(_conv3x3_kernel, strip_h=strip_h, W=W,
                               apply_relu=apply_relu, fold_dx=fold_dx)
    return pl.pallas_call(
        kernel,
        out_shape=jax.ShapeDtypeStruct((N, H, W, Cout), jnp.float32),
        grid=(N, num_strips),
        in_specs=[
            x_spec,
            pl.BlockSpec((3, 3 * Cin, Cout), lambda n, i: (0, 0, 0)),
            pl.BlockSpec((1, Cout), lambda n, i: (0, 0)),
        ],
        out_specs=pl.BlockSpec((1, strip_h, W, Cout), lambda n, i: (n, i, 0, 0)),
        compiler_params=pltpu.CompilerParams(
            # Both axes are independent -> megacore may shard either, so v7x
            # keeps both TensorCores busy even at batch 1.
            dimension_semantics=("parallel", "parallel"),
            # Above the 16/32 MiB scoped defaults, below v7x's 64 MiB physical.
            vmem_limit_bytes=48 * 1024 * 1024,
        ),
    )(xp, wf, b2)


def _vmem_strip_budget_bytes():
    # Per-block working-set budget.  v5e/v6e (128 MiB VMEM) can run taller
    # strips than v7x (64 MiB); scale with the chip when the query exists.
    try:
        cap = pltpu.get_tpu_info().vmem_capacity_bytes
        return max(8 << 20, cap // 8)
    except Exception:
        return 8 << 20


def _pick_strip_h(H, W, cin, cout, budget_bytes):
    """Largest strip height dividing H whose double-buffered working set fits."""
    best = 1
    for s in range(1, H + 1):
        if H % s:
            continue
        need = (2 * (s + 2) * (W + 2) * cin * 4          # input strip x2 (f32)
                + 2 * s * W * cout * 4                   # output strip x2 (f32)
                + 2 * 9 * cin * cout * 2                 # bf16 weights x2
                + 2 * s * W * max(3 * cin, cout) * 4)    # patch + accumulator
        if need <= budget_bytes:
            best = s
    return best


def conv3x3_same(x, w, b, *, apply_relu, strip_h=None):
    """x: (N,H,W,Cin) f32, w: (3,3,Cin,Cout), b: (Cout,) -> (N,H,W,Cout) f32."""
    N, H, W, Cin = x.shape
    Cout = w.shape[-1]
    if strip_h is None:
        strip_h = _pick_strip_h(H, W, Cin, Cout, _vmem_strip_budget_bytes())
    strip_h = max(1, min(int(strip_h), H))
    while H % strip_h:               # keep strips an exact cover of H
        strip_h -= 1

    # TODO(synk): write conv outputs directly into the interior of a
    # pre-padded buffer (and fuse the final 64->1 conv into conv5's epilogue)
    # to remove the per-layer jnp.pad / HBM round trips.
    xp = jnp.pad(x, ((0, 0), (1, 1), (1, 1), (0, 0)))         # zero 'same' pad
    wf = w.reshape(3, 3 * Cin, Cout).astype(jnp.bfloat16)      # fold (dx,cin)->K
    b2 = b.reshape(1, Cout).astype(jnp.float32)
    fold_dx = (Cin % 128 == 0)       # lane-aligned concat only (heavy layers)

    kwargs = dict(N=N, H=H, W=W, Cin=Cin, Cout=Cout, apply_relu=apply_relu)
    try:
        return _conv3x3_call(xp, wf, b2, strip_h=strip_h, fold_dx=fold_dx, **kwargs)
    except Exception:
        # Defensive fallback: whole-image blocked tiling with unfolded taps
        # (the known-good configuration) in case element-offset indexing or
        # lane-dim concatenation is unavailable in this build.
        if strip_h == H and not fold_dx:
            raise
        return _conv3x3_call(xp, wf, b2, strip_h=H, fold_dx=False, **kwargs)


def init_params(key):
    """Deterministic init mimicking PyTorch Conv2d defaults (uniform +/- 1/sqrt(fan_in))."""
    channels = [(6, 64), (64, 128), (128, 256), (256, 128), (128, 64), (64, 1)]
    params = []
    for (cin, cout) in channels:
        key, kw, kb = jax.random.split(key, 3)
        bound = 1.0 / jnp.sqrt(cin * 3 * 3)
        w = jax.random.uniform(kw, (3, 3, cin, cout), jnp.float32, -bound, bound)
        b = jax.random.uniform(kb, (cout,), jnp.float32, -bound, bound)
        params.append((w, b))
    return params


def disparity_cnn_forward(left_img, right_img, params, *, strip_h=None):
    """left_img, right_img: (N, 3, H, W) NCHW.  Returns (N, 1, H, W) disparity map."""
    l = jnp.transpose(left_img, (0, 2, 3, 1))
    r = jnp.transpose(right_img, (0, 2, 3, 1))
    x = jnp.concatenate([l, r], axis=-1)                      # (N, H, W, 6)
    for i, (w, b) in enumerate(params):
        last = (i == len(params) - 1)
        x = conv3x3_same(x, w, b, apply_relu=not last, strip_h=strip_h)
    return jnp.transpose(x, (0, 3, 1, 2))                     # NHWC -> NCHW


def _reference_forward(left_img, right_img, params):
    """Pure-JAX reference (lax.conv) for validation."""
    x = jnp.concatenate([left_img, right_img], axis=1)        # (N, 6, H, W)
    for i, (w, b) in enumerate(params):
        w_oihw = jnp.transpose(w, (3, 2, 0, 1))
        x = jax.lax.conv_general_dilated(
            x, w_oihw, window_strides=(1, 1), padding="SAME",
            dimension_numbers=("NCHW", "OIHW", "NCHW"))
        x = x + b[None, :, None, None]
        if i != len(params) - 1:
            x = jnp.maximum(x, 0.0)
    return x


if __name__ == "__main__":
    key = jax.random.PRNGKey(0)
    kp, kl, kr = jax.random.split(key, 3)

    N, C, H, W = 2, 3, 16, 16
    left = jax.random.normal(kl, (N, C, H, W), jnp.float32)
    right = jax.random.normal(kr, (N, C, H, W), jnp.float32)
    params = init_params(kp)

    # strip_h=8 exercises the multi-strip (overlapping-window) path at H=16.
    out = disparity_cnn_forward(left, right, params, strip_h=8)
    out = jax.block_until_ready(out)
    assert out.shape == (N, 1, H, W), out.shape

    ref = jax.block_until_ready(_reference_forward(left, right, params))
    err = float(jnp.max(jnp.abs(out - ref)))
    scale = float(jnp.max(jnp.abs(ref)))
    # bf16 MXU operands with f32 accumulation: allow ~ percent-level error.
    assert err <= 2e-2 + 3e-2 * scale, (err, scale)

    print("KERNEL_OK")
</pallas_src>

<mosaic_0001>
module attributes {stable_mosaic.version = 11 : i64} {
  func.func @_conv3x3_kernel(%arg0: i32, %arg1: i32, %arg2: memref<1x18x18x6xf32, #tpu.memory_space<vmem>>, %arg3: memref<3x18x64xbf16, #tpu.memory_space<vmem>>, %arg4: memref<1x64xf32, #tpu.memory_space<vmem>>, %arg5: memref<1x16x16x64xf32, #tpu.memory_space<vmem>>) attributes {dimension_semantics = [#tpu.dimension_semantics<parallel>, #tpu.dimension_semantics<parallel>], iteration_bounds = array<i64: 2, 1>, scalar_prefetch = 0 : i64, scratch_operands = 0 : i64, tpu.core_type = #tpu.core_type<tc>, window_params = [{transform_indices = @transform_0, window_bounds = array<i64: 1, 18, 18, 6>}, {pipeline_mode = #tpu.pipeline_mode<synchronous>, transform_indices = @transform_1, window_bounds = array<i64: 3, 18, 64>}, {pipeline_mode = #tpu.pipeline_mode<synchronous>, transform_indices = @transform_2, window_bounds = array<i64: 1, 64>}, {transform_indices = @transform_3, window_bounds = array<i64: 1, 16, 16, 64>}]} {
    %c0 = arith.constant 0 : index
    %c0_0 = arith.constant 0 : index
    %c0_1 = arith.constant 0 : index
    %c0_2 = arith.constant 0 : index
    %0 = vector.load %arg2[%c0, %c0_0, %c0_1, %c0_2] : memref<1x18x18x6xf32, #tpu.memory_space<vmem>>, vector<1x18x18x6xf32>
    %1 = vector.shape_cast %0 : vector<1x18x18x6xf32> to vector<18x18x6xf32>
    %cst = arith.constant 0.000000e+00 : f32
    %2 = vector.broadcast %cst : f32 to vector<256x64xf32>
    %3 = vector.extract_strided_slice %1 {offsets = [0, 0, 0], sizes = [16, 18, 6], strides = [1, 1, 1]} : vector<18x18x6xf32> to vector<16x18x6xf32>
    %4 = vector.extract_strided_slice %3 {offsets = [0, 0, 0], sizes = [16, 16, 6], strides = [1, 1, 1]} : vector<16x18x6xf32> to vector<16x16x6xf32>
    %5 = vector.shape_cast %4 : vector<16x16x6xf32> to vector<256x6xf32>
    %6 = arith.truncf %5 : vector<256x6xf32> to vector<256x6xbf16>
    %c0_3 = arith.constant 0 : index
    %c0_4 = arith.constant 0 : index
    %c0_5 = arith.constant 0 : index
    %7 = vector.load %arg3[%c0_3, %c0_4, %c0_5] : memref<3x18x64xbf16, #tpu.memory_space<vmem>>, vector<1x6x64xbf16>
    %8 = vector.shape_cast %7 : vector<1x6x64xbf16> to vector<6x64xbf16>
    %cst_6 = arith.constant dense<0.000000e+00> : vector<256x64xf32>
    %9 = tpu.matmul %6, %8, %cst_6 {dimension_numbers = #tpu.dot_dimension_numbers<[1], [0], [0], [1], [0, 0, 1, 1], [], []>} : vector<256x6xbf16>, vector<6x64xbf16>, vector<256x64xf32> -> vector<256x64xf32>
    %10 = arith.addf %2, %9 : vector<256x64xf32>
    %11 = vector.extract_strided_slice %3 {offsets = [0, 1, 0], sizes = [16, 16, 6], strides = [1, 1, 1]} : vector<16x18x6xf32> to vector<16x16x6xf32>
    %12 = vector.shape_cast %11 : vector<16x16x6xf32> to vector<256x6xf32>
    %13 = arith.truncf %12 : vector<256x6xf32> to vector<256x6xbf16>
    %c0_7 = arith.constant 0 : index
    %c6 = arith.constant 6 : index
    %c0_8 = arith.constant 0 : index
    %14 = vector.load %arg3[%c0_7, %c6, %c0_8] : memref<3x18x64xbf16, #tpu.memory_space<vmem>>, vector<1x6x64xbf16>
    %15 = vector.shape_cast %14 : vector<1x6x64xbf16> to vector<6x64xbf16>
    %cst_9 = arith.constant dense<0.000000e+00> : vector<256x64xf32>
    %16 = tpu.matmul %13, %15, %cst_9 {dimension_numbers = #tpu.dot_dimension_numbers<[1], [0], [0], [1], [0, 0, 1, 1], [], []>} : vector<256x6xbf16>, vector<6x64xbf16>, vector<256x64xf32> -> vector<256x64xf32>
    %17 = arith.addf %10, %16 : vector<256x64xf32>
    %18 = vector.extract_strided_slice %3 {offsets = [0, 2, 0], sizes = [16, 16, 6], strides = [1, 1, 1]} : vector<16x18x6xf32> to vector<16x16x6xf32>
    %19 = vector.shape_cast %18 : vector<16x16x6xf32> to vector<256x6xf32>
    %20 = arith.truncf %19 : vector<256x6xf32> to vector<256x6xbf16>
    %c0_10 = arith.constant 0 : index
    %c12 = arith.constant 12 : index
    %c0_11 = arith.constant 0 : index
    %21 = vector.load %arg3[%c0_10, %c12, %c0_11] : memref<3x18x64xbf16, #tpu.memory_space<vmem>>, vector<1x6x64xbf16>
    %22 = vector.shape_cast %21 : vector<1x6x64xbf16> to vector<6x64xbf16>
    %cst_12 = arith.constant dense<0.000000e+00> : vector<256x64xf32>
    %23 = tpu.matmul %20, %22, %cst_12 {dimension_numbers = #tpu.dot_dimension_numbers<[1], [0], [0], [1], [0, 0, 1, 1], [], []>} : vector<256x6xbf16>, vector<6x64xbf16>, vector<256x64xf32> -> vector<256x64xf32>
    %24 = arith.addf %17, %23 : vector<256x64xf32>
    %25 = vector.extract_strided_slice %1 {offsets = [1, 0, 0], sizes = [16, 18, 6], strides = [1, 1, 1]} : vector<18x18x6xf32> to vector<16x18x6xf32>
    %26 = vector.extract_strided_slice %25 {offsets = [0, 0, 0], sizes = [16, 16, 6], strides = [1, 1, 1]} : vector<16x18x6xf32> to vector<16x16x6xf32>
    %27 = vector.shape_cast %26 : vector<16x16x6xf32> to vector<256x6xf32>
    %28 = arith.truncf %27 : vector<256x6xf32> to vector<256x6xbf16>
    %c1 = arith.constant 1 : index
    %c0_13 = arith.constant 0 : index
    %c0_14 = arith.constant 0 : index
    %29 = vector.load %arg3[%c1, %c0_13, %c0_14] : memref<3x18x64xbf16, #tpu.memory_space<vmem>>, vector<1x6x64xbf16>
    %30 = vector.shape_cast %29 : vector<1x6x64xbf16> to vector<6x64xbf16>
    %cst_15 = arith.constant dense<0.000000e+00> : vector<256x64xf32>
    %31 = tpu.matmul %28, %30, %cst_15 {dimension_numbers = #tpu.dot_dimension_numbers<[1], [0], [0], [1], [0, 0, 1, 1], [], []>} : vector<256x6xbf16>, vector<6x64xbf16>, vector<256x64xf32> -> vector<256x64xf32>
    %32 = arith.addf %24, %31 : vector<256x64xf32>
    %33 = vector.extract_strided_slice %25 {offsets = [0, 1, 0], sizes = [16, 16, 6], strides = [1, 1, 1]} : vector<16x18x6xf32> to vector<16x16x6xf32>
    %34 = vector.shape_cast %33 : vector<16x16x6xf32> to vector<256x6xf32>
    %35 = arith.truncf %34 : vector<256x6xf32> to vector<256x6xbf16>
    %c1_16 = arith.constant 1 : index
    %c6_17 = arith.constant 6 : index
    %c0_18 = arith.constant 0 : index
    %36 = vector.load %arg3[%c1_16, %c6_17, %c0_18] : memref<3x18x64xbf16, #tpu.memory_space<vmem>>, vector<1x6x64xbf16>
    %37 = vector.shape_cast %36 : vector<1x6x64xbf16> to vector<6x64xbf16>
    %cst_19 = arith.constant dense<0.000000e+00> : vector<256x64xf32>
    %38 = tpu.matmul %35, %37, %cst_19 {dimension_numbers = #tpu.dot_dimension_numbers<[1], [0], [0], [1], [0, 0, 1, 1], [], []>} : vector<256x6xbf16>, vector<6x64xbf16>, vector<256x64xf32> -> vector<256x64xf32>
    %39 = arith.addf %32, %38 : vector<256x64xf32>
    %40 = vector.extract_strided_slice %25 {offsets = [0, 2, 0], sizes = [16, 16, 6], strides = [1, 1, 1]} : vector<16x18x6xf32> to vector<16x16x6xf32>
    %41 = vector.shape_cast %40 : vector<16x16x6xf32> to vector<256x6xf32>
    %42 = arith.truncf %41 : vector<256x6xf32> to vector<256x6xbf16>
    %c1_20 = arith.constant 1 : index
    %c12_21 = arith.constant 12 : index
    %c0_22 = arith.constant 0 : index
    %43 = vector.load %arg3[%c1_20, %c12_21, %c0_22] : memref<3x18x64xbf16, #tpu.memory_space<vmem>>, vector<1x6x64xbf16>
    %44 = vector.shape_cast %43 : vector<1x6x64xbf16> to vector<6x64xbf16>
    %cst_23 = arith.constant dense<0.000000e+00> : vector<256x64xf32>
    %45 = tpu.matmul %42, %44, %cst_23 {dimension_numbers = #tpu.dot_dimension_numbers<[1], [0], [0], [1], [0, 0, 1, 1], [], []>} : vector<256x6xbf16>, vector<6x64xbf16>, vector<256x64xf32> -> vector<256x64xf32>
    %46 = arith.addf %39, %45 : vector<256x64xf32>
    %47 = vector.extract_strided_slice %1 {offsets = [2, 0, 0], sizes = [16, 18, 6], strides = [1, 1, 1]} : vector<18x18x6xf32> to vector<16x18x6xf32>
    %48 = vector.extract_strided_slice %47 {offsets = [0, 0, 0], sizes = [16, 16, 6], strides = [1, 1, 1]} : vector<16x18x6xf32> to vector<16x16x6xf32>
    %49 = vector.shape_cast %48 : vector<16x16x6xf32> to vector<256x6xf32>
    %50 = arith.truncf %49 : vector<256x6xf32> to vector<256x6xbf16>
    %c2 = arith.constant 2 : index
    %c0_24 = arith.constant 0 : index
    %c0_25 = arith.constant 0 : index
    %51 = vector.load %arg3[%c2, %c0_24, %c0_25] : memref<3x18x64xbf16, #tpu.memory_space<vmem>>, vector<1x6x64xbf16>
    %52 = vector.shape_cast %51 : vector<1x6x64xbf16> to vector<6x64xbf16>
    %cst_26 = arith.constant dense<0.000000e+00> : vector<256x64xf32>
    %53 = tpu.matmul %50, %52, %cst_26 {dimension_numbers = #tpu.dot_dimension_numbers<[1], [0], [0], [1], [0, 0, 1, 1], [], []>} : vector<256x6xbf16>, vector<6x64xbf16>, vector<256x64xf32> -> vector<256x64xf32>
    %54 = arith.addf %46, %53 : vector<256x64xf32>
    %55 = vector.extract_strided_slice %47 {offsets = [0, 1, 0], sizes = [16, 16, 6], strides = [1, 1, 1]} : vector<16x18x6xf32> to vector<16x16x6xf32>
    %56 = vector.shape_cast %55 : vector<16x16x6xf32> to vector<256x6xf32>
    %57 = arith.truncf %56 : vector<256x6xf32> to vector<256x6xbf16>
    %c2_27 = arith.constant 2 : index
    %c6_28 = arith.constant 6 : index
    %c0_29 = arith.constant 0 : index
    %58 = vector.load %arg3[%c2_27, %c6_28, %c0_29] : memref<3x18x64xbf16, #tpu.memory_space<vmem>>, vector<1x6x64xbf16>
    %59 = vector.shape_cast %58 : vector<1x6x64xbf16> to vector<6x64xbf16>
    %cst_30 = arith.constant dense<0.000000e+00> : vector<256x64xf32>
    %60 = tpu.matmul %57, %59, %cst_30 {dimension_numbers = #tpu.dot_dimension_numbers<[1], [0], [0], [1], [0, 0, 1, 1], [], []>} : vector<256x6xbf16>, vector<6x64xbf16>, vector<256x64xf32> -> vector<256x64xf32>
    %61 = arith.addf %54, %60 : vector<256x64xf32>
    %62 = vector.extract_strided_slice %47 {offsets = [0, 2, 0], sizes = [16, 16, 6], strides = [1, 1, 1]} : vector<16x18x6xf32> to vector<16x16x6xf32>
    %63 = vector.shape_cast %62 : vector<16x16x6xf32> to vector<256x6xf32>
    %64 = arith.truncf %63 : vector<256x6xf32> to vector<256x6xbf16>
    %c2_31 = arith.constant 2 : index
    %c12_32 = arith.constant 12 : index
    %c0_33 = arith.constant 0 : index
    %65 = vector.load %arg3[%c2_31, %c12_32, %c0_33] : memref<3x18x64xbf16, #tpu.memory_space<vmem>>, vector<1x6x64xbf16>
    %66 = vector.shape_cast %65 : vector<1x6x64xbf16> to vector<6x64xbf16>
    %cst_34 = arith.constant dense<0.000000e+00> : vector<256x64xf32>
    %67 = tpu.matmul %64, %66, %cst_34 {dimension_numbers = #tpu.dot_dimension_numbers<[1], [0], [0], [1], [0, 0, 1, 1], [], []>} : vector<256x6xbf16>, vector<6x64xbf16>, vector<256x64xf32> -> vector<256x64xf32>
    %68 = arith.addf %61, %67 : vector<256x64xf32>
    %c0_35 = arith.constant 0 : index
    %c0_36 = arith.constant 0 : index
    %69 = vector.load %arg4[%c0_35, %c0_36] : memref<1x64xf32, #tpu.memory_space<vmem>>, vector<1x64xf32>
    %70 = vector.shape_cast %69 : vector<1x64xf32> to vector<64xf32>
    %71 = vector.shape_cast %70 : vector<64xf32> to vector<1x64xf32>
    %72 = vector.broadcast %71 : vector<1x64xf32> to vector<256x64xf32>
    %73 = arith.addf %68, %72 : vector<256x64xf32>
    %cst_37 = arith.constant 0.000000e+00 : f32
    %74 = vector.broadcast %cst_37 : f32 to vector<256x64xf32>
    %75 = arith.maximumf %73, %74 : vector<256x64xf32>
    %76 = vector.shape_cast %75 : vector<256x64xf32> to vector<16x16x64xf32>
    %c0_38 = arith.constant 0 : index
    %c0_39 = arith.constant 0 : index
    %c0_40 = arith.constant 0 : index
    %c0_41 = arith.constant 0 : index
    %77 = vector.load %arg5[%c0_38, %c0_39, %c0_40, %c0_41] : memref<1x16x16x64xf32, #tpu.memory_space<vmem>>, vector<1x16x16x64xf32>
    %78 = vector.shape_cast %77 : vector<1x16x16x64xf32> to vector<16x16x64xf32>
    %79 = vector.shape_cast %76 : vector<16x16x64xf32> to vector<1x16x16x64xf32>
    tpu.vector_store %arg5[%c0_38, %c0_39, %c0_40, %c0_41], %79 {strides = array<i32>} : memref<1x16x16x64xf32, #tpu.memory_space<vmem>>, vector<1x16x16x64xf32>,
    return
  }
  func.func @transform_0(%arg0: i32, %arg1: i32) -> (i32, i32, i32, i32) {
    %c0_i32 = arith.constant 0 : i32
    %c0_i32_0 = arith.constant 0 : i32
    %c0_i32_1 = arith.constant 0 : i32
    %c0_i32_2 = arith.constant 0 : i32
    return %arg0, %c0_i32, %c0_i32_0, %c0_i32_1 : i32, i32, i32, i32
  }
  func.func @transform_1(%arg0: i32, %arg1: i32) -> (i32, i32, i32) {
    %c0_i32 = arith.constant 0 : i32
    %c0_i32_0 = arith.constant 0 : i32
    %c0_i32_1 = arith.constant 0 : i32
    %c0_i32_2 = arith.constant 0 : i32
    return %c0_i32, %c0_i32_0, %c0_i32_1 : i32, i32, i32
  }
  func.func @transform_2(%arg0: i32, %arg1: i32) -> (i32, i32) {
    %c0_i32 = arith.constant 0 : i32
    %c0_i32_0 = arith.constant 0 : i32
    %c0_i32_1 = arith.constant 0 : i32
    return %c0_i32, %c0_i32_0 : i32, i32
  }
  func.func @transform_3(%arg0: i32, %arg1: i32) -> (i32, i32, i32, i32) {
    %c0_i32 = arith.constant 0 : i32
    %c0_i32_0 = arith.constant 0 : i32
    %c0_i32_1 = arith.constant 0 : i32
    return %arg0, %arg1, %c0_i32, %c0_i32_0 : i32, i32, i32, i32
  }
}

</mosaic_0001>

<llo_original>
// kernel: tpu_custom_call.1
$region0: #{tpu_custom_call.1}
  #allocation0 [shape = 'u32[]', space=smem, size = 0x4, offset = 0x4, fixed_abs, tag = 'smem constant byte address 0x4 - core index']
  #allocation1 [shape = 'u32[144,128]{1,0:T(1,128)}', space=vmem, size = 0x12000, scoped, tag = 'internal scratch']
  %s0 = inlined_call_operand.vmem [shape: f32[2,18,18,6], index: 0, kind: input, shape index: {}]
  %s1 = inlined_call_operand.vmem [shape: bf16[3,18,64], index: 1, kind: input, shape index: {}]
  %s2 = inlined_call_operand.vmem [shape: f32[1,64], index: 2, kind: input, shape index: {}]
  %s3 = inlined_call_operand.hbm [shape: f32[2,16,16,64], index: 3, kind: output, shape index: {}]
  %s4 = sld [smem:[#allocation0]]
  $region45: #{tpu_custom_call.1} parent=0
    _
  %s6 = ssub.s32 1, %s4
  %s7 = scalar_select 0, %s6, %s4
  $region1: #{tpu_custom_call.1} parent=0
    #allocation2 [shape = 'u8[262144]{0}', space=vmem, size = 0x40000, scoped, tag = 'output window, operand 0']
    #allocation3 [shape = 's32[2]{0}', space=sflag, size = 0x8, scoped, tag = 'scoped memory for tpu_custom_call.1']
    %8 = vsyncpa [#allocation3], 0
    %s9 = scalar_lea.sflag [#allocation3], 1
    %10 = vsyncpa %s9, 0
    loop: start=0, step=1, limit=4
    $region2: #{tpu_custom_call.1} parent=1 // loop_pre_header
      _
    $region3: #{tpu_custom_call.1} parent=1 // loop_header
      %s12 = sphi 0, %s16
      %p13 = scmp.ge.s32.totalorder %s12, 4
      %s19 = sphi 0, %s31
      %s20 = sphi 0, %s27
      %s21 = sphi 0, %s19
      %s22 = sphi 0, %s20
      %s23 = sphi 0, %s21
      %s24 = sphi 0, %s22
      %s34 = sphi 0, %s36
      %s37 = sphi 0, %s34
      %s38 = sphi 0, %s37
      %s54 = sphi 0, %s38
      %s58 = sphi 0, %s58
      %s60 = sphi 0, %s58
      %s61 = sphi 0, %s60
      %s75 = sphi 0, %s61
      %s79 = sphi 0, %s79
      %s81 = sphi 0, %s79
      %s82 = sphi 0, %s81
      %s96 = sphi 0, %s82
      %s104 = sphi 0, %s106
      %s107 = sphi 0, %s104
      %s108 = sphi 0, %s107
      %s124 = sphi 0, %s108
    $region4: #{tpu_custom_call.1} parent=1 // loop_header_branch
      %15 = sbr.rel (%p13) target = $region8
    $region5: #{tpu_custom_call.1} parent=1 // loop_body
      %s17 = ssub.s32 %s12, 1
      %s18 = ssub.s32 %s12, 2
      %s25 = sadd.s32 1, %s20
      %p26 = scmp.ge.s32.totalorder %s25, 1
      %s27 = scalar_select %p26, 0, %s25
      %s28 = sadd.s32 1, %s19
      %s29 = scalar_select %p26, %s28, %s19
      %p30 = scmp.ge.s32.totalorder %s29, 2
      %s31 = scalar_select %p30, 0, %s29
      %s32 = ssub.s32 %s19, %s31
      %p33 = scmp.eq.s32.totalorder %s32, 0
      %s35 = sadd.s32 %s34, 1
      %s36 = scalar_select %p33, %s34, %s35
      %p39 = pneg %p33
      %p40 = scmp.eq.s32.totalorder %s12, 1
      %p41 = por %p39, %p40
      %p42 = scmp.ne.s32.totalorder %s34, %s37
      %p43 = scmp.eq.s32.totalorder %s12, 0
      %p44 = por %p42, %p43
      %p45 = scmp.ne.s32.totalorder %s34, %s37
      %p46 = scmp.eq.s32.totalorder %s17, 1
      %p47 = por %p45, %p46
      %p48 = scmp.ne.s32.totalorder %s37, %s38
      %p49 = scmp.eq.s32.totalorder %s17, 0
      %p50 = por %p48, %p49
      %p51 = scmp.ne.s32.totalorder %s37, %s38
      %p52 = scmp.eq.s32.totalorder %s18, 1
      %p53 = por %p51, %p52
      %p55 = scmp.ne.s32.totalorder %s38, %s54
      %p56 = scmp.eq.s32.totalorder %s18, 0
      %p57 = por %p55, %p56
      %s59 = sadd.s32 %s58, 1
      %p62 = scmp.eq.s32.totalorder %s12, 1
      %p63 = scmp.ne.s32.totalorder %s58, %s60
      %p64 = scmp.eq.s32.totalorder %s12, 0
      %p65 = por %p63, %p64
      %p66 = scmp.ne.s32.totalorder %s58, %s60
      %p67 = scmp.eq.s32.totalorder %s17, 1
      %p68 = por %p66, %p67
      %p69 = scmp.ne.s32.totalorder %s60, %s61
      %p70 = scmp.eq.s32.totalorder %s17, 0
      %p71 = por %p69, %p70
      %p72 = scmp.ne.s32.totalorder %s60, %s61
      %p73 = scmp.eq.s32.totalorder %s18, 1
      %p74 = por %p72, %p73
      %p76 = scmp.ne.s32.totalorder %s61, %s75
      %p77 = scmp.eq.s32.totalorder %s18, 0
      %p78 = por %p76, %p77
      %s80 = sadd.s32 %s79, 1
      %p83 = scmp.eq.s32.totalorder %s12, 1
      %p84 = scmp.ne.s32.totalorder %s79, %s81
      %p85 = scmp.eq.s32.totalorder %s12, 0
      %p86 = por %p84, %p85
      %p87 = scmp.ne.s32.totalorder %s79, %s81
      %p88 = scmp.eq.s32.totalorder %s17, 1
      %p89 = por %p87, %p88
      %p90 = scmp.ne.s32.totalorder %s81, %s82
      %p91 = scmp.eq.s32.totalorder %s17, 0
      %p92 = por %p90, %p91
      %p93 = scmp.ne.s32.totalorder %s81, %s82
      %p94 = scmp.eq.s32.totalorder %s18, 1
      %p95 = por %p93, %p94
      %p97 = scmp.ne.s32.totalorder %s82, %s96
      %p98 = scmp.eq.s32.totalorder %s18, 0
      %p99 = por %p97, %p98
      %s100 = ssub.s32 %s19, %s31
      %s101 = ssub.s32 %s20, %s27
      %s102 = sor.u32 %s100, %s101
      %p103 = scmp.eq.s32.totalorder %s102, 0
      %s105 = sadd.s32 %s104, 1
      %s106 = scalar_select %p103, %s104, %s105
      %p109 = pneg %p103
      %p110 = scmp.eq.s32.totalorder %s12, 1
      %p111 = por %p109, %p110
      %p112 = scmp.ne.s32.totalorder %s104, %s107
      %p113 = scmp.eq.s32.totalorder %s12, 0
      %p114 = por %p112, %p113
      %p115 = scmp.ne.s32.totalorder %s104, %s107
      %p116 = scmp.eq.s32.totalorder %s17, 1
      %p117 = por %p115, %p116
      %p118 = scmp.ne.s32.totalorder %s107, %s108
      %p119 = scmp.eq.s32.totalorder %s17, 0
      %p120 = por %p118, %p119
      %p121 = scmp.ne.s32.totalorder %s107, %s108
      %p122 = scmp.eq.s32.totalorder %s18, 1
      %p123 = por %p121, %p122
      %p125 = scmp.ne.s32.totalorder %s108, %s124
      %p126 = scmp.eq.s32.totalorder %s18, 0
      %p127 = por %p125, %p126
      %p128 = scmp.le.s32.totalorder 1, %s12
      %p129 = scmp.lt.s32.totalorder %s12, 3
      %p130 = pnand %p128, %p129
      %p131 = pneg %p130
      // Predicated region
      $region9: #{tpu_custom_call.1} parent=5 // pred_check
        _
      $region10: #{tpu_custom_call.1} parent=5 // pred_check_branch
        %133 = sbr.rel (%p130) target = $region12
      $region11: #{tpu_custom_call.1} parent=5 // pred_region
        %s134 = ssub.s32 %s12, 1
        // Predicated region
        $region13: #{tpu_custom_call.1} parent=11 // pred_check
          %p135 = pneg %p71
        $region14: #{tpu_custom_call.1} parent=11 // pred_check_branch
          %137 = sbr.rel (%p135) target = $region16
        $region15: #{tpu_custom_call.1} parent=11 // pred_region
          _
        $region16: #{tpu_custom_call.1} parent=11 // pred_fallthru
          _
        // Predicated region
        $region17: #{tpu_custom_call.1} parent=11 // pred_check
          %p138 = pneg %p92
        $region18: #{tpu_custom_call.1} parent=11 // pred_check_branch
          %140 = sbr.rel (%p138) target = $region20
        $region19: #{tpu_custom_call.1} parent=11 // pred_region
          _
        $region20: #{tpu_custom_call.1} parent=11 // pred_fallthru
          _
      $region12: #{tpu_custom_call.1} parent=5 // pred_fallthru
        _
      %p141 = scmp.lt.s32.totalorder %s12, 2
      // Predicated region
      $region21: #{tpu_custom_call.1} parent=5 // pred_check
        %p142 = pneg %p141
      $region22: #{tpu_custom_call.1} parent=5 // pred_check_branch
        %144 = sbr.rel (%p142) target = $region24
      $region23: #{tpu_custom_call.1} parent=5 // pred_region
        // Predicated region
        $region25: #{tpu_custom_call.1} parent=23 // pred_check
          %p145 = pneg %p44
        $region26: #{tpu_custom_call.1} parent=23 // pred_check_branch
          %147 = sbr.rel (%p145) target = $region28
        $region27: #{tpu_custom_call.1} parent=23 // pred_region
          %p148 = scmp.lt.s32.totalorder %s19, 1
          %s149 = scalar_select %p148, %s19, 1
          %s150 = smul.addr %s149, 54
          %s151 = smul.addr %s150, 8
          %s152 = scalar_lea.vmem %s0, %s151
        $region28: #{tpu_custom_call.1} parent=23 // pred_fallthru
          _
      $region24: #{tpu_custom_call.1} parent=5 // pred_fallthru
        _
      %p153 = scmp.le.s32.totalorder 1, %s12
      %p154 = scmp.lt.s32.totalorder %s12, 3
      %p155 = pnand %p153, %p154
      %p156 = pneg %p155
      // Predicated region
      $region29: #{tpu_custom_call.1} parent=5 // pred_check
        _
      $region30: #{tpu_custom_call.1} parent=5 // pred_check_branch
        %158 = sbr.rel (%p155) target = $region32
      $region31: #{tpu_custom_call.1} parent=5 // pred_region
        %s159 = ssub.s32 %s12, 1
        %p160 = scmp.lt.s32.totalorder %s21, 1
        %s161 = scalar_select %p160, %s21, 1
        %s162 = smul.addr %s161, 54
        %s163 = smul.addr %s162, 8
        %s164 = scalar_lea.vmem %s0, %s163
        %p165 = pneg %p50
        %p166 = pneg %p47
        %p167 = pneg %p71
        %p168 = pneg %p68
        %p169 = pneg %p92
        %p170 = pneg %p89
        %p171 = pneg %p120
        %p172 = pneg %p117
        %s173 = sand.u32 %s107, 1
        %s174 = scalar_lea.sflag [#allocation3], %s173
        %s175 = sand.u32 %s107, 1
        %s176 = smul.addr %s175, 256
        %s177 = scalar_lea.vmem [#allocation2], %s176
        %p178 = scmp.lt.s32.totalorder %s21, 1
        %s179 = scalar_select %p178, %s21, 1
        %s180 = smul.addr %s179, 54
        %s181 = smul.addr %s180, 8
        %s182 = scalar_lea.vmem %s0, %s181
        %s183 = smul.u32 16, %s22
        %v185 = vld [vmem:[%s182] sm:$0xff]
        %v186 = vld [vmem:[%s182 + $0x8] sm:$0xff]
        %v187 = vld [vmem:[%s182 + $0x10] sm:$0x3]
        %v188 = vld [vmem:[%s182 + $0x18] sm:$0xff]
        %v189 = vld [vmem:[%s182 + $0x20] sm:$0xff]
        %v190 = vld [vmem:[%s182 + $0x28] sm:$0x3]
        %v191 = vld [vmem:[%s182 + $0x30] sm:$0xff]
        %v192 = vld [vmem:[%s182 + $0x38] sm:$0xff]
        %v193 = vld [vmem:[%s182 + $0x40] sm:$0x3]
        %v194 = vld [vmem:[%s182 + $0x48] sm:$0xff]
        %v195 = vld [vmem:[%s182 + $0x50] sm:$0xff]
        %v196 = vld [vmem:[%s182 + $0x58] sm:$0x3]
        %v197 = vld [vmem:[%s182 + $0x60] sm:$0xff]
        %v198 = vld [vmem:[%s182 + $0x68] sm:$0xff]
        %v199 = vld [vmem:[%s182 + $0x70] sm:$0x3]
        %v200 = vld [vmem:[%s182 + $0x78] sm:$0xff]
        %v201 = vld [vmem:[%s182 + $0x80] sm:$0xff]
        %v202 = vld [vmem:[%s182 + $0x88] sm:$0x3]
        %v203 = vld [vmem:[%s182 + $0x90] sm:$0xff]
        %v204 = vld [vmem:[%s182 + $0x98] sm:$0xff]
        %v205 = vld [vmem:[%s182 + $0xa0] sm:$0x3]
        %v206 = vld [vmem:[%s182 + $0xa8] sm:$0xff]
        %v207 = vld [vmem:[%s182 + $0xb0] sm:$0xff]
        %v208 = vld [vmem:[%s182 + $0xb8] sm:$0x3]
        %v209 = vld [vmem:[%s182 + $0xc0] sm:$0xff]
        %v210 = vld [vmem:[%s182 + $0xc8] sm:$0xff]
        %v211 = vld [vmem:[%s182 + $0xd0] sm:$0x3]
        %v212 = vld [vmem:[%s182 + $0xd8] sm:$0xff]
        %v213 = vld [vmem:[%s182 + $0xe0] sm:$0xff]
        %v214 = vld [vmem:[%s182 + $0xe8] sm:$0x3]
        %v215 = vld [vmem:[%s182 + $0xf0] sm:$0xff]
        %v216 = vld [vmem:[%s182 + $0xf8] sm:$0xff]
        %v217 = vld [vmem:[%s182 + $0x100] sm:$0x3]
        %v218 = vld [vmem:[%s182 + $0x108] sm:$0xff]
        %v219 = vld [vmem:[%s182 + $0x110] sm:$0xff]
        %v220 = vld [vmem:[%s182 + $0x118] sm:$0x3]
        %v221 = vld [vmem:[%s182 + $0x120] sm:$0xff]
        %v222 = vld [vmem:[%s182 + $0x128] sm:$0xff]
        %v223 = vld [vmem:[%s182 + $0x130] sm:$0x3]
        %v224 = vld [vmem:[%s182 + $0x138] sm:$0xff]
        %v225 = vld [vmem:[%s182 + $0x140] sm:$0xff]
        %v226 = vld [vmem:[%s182 + $0x148] sm:$0x3]
        %v227 = vld [vmem:[%s182 + $0x150] sm:$0xff]
        %v228 = vld [vmem:[%s182 + $0x158] sm:$0xff]
        %v229 = vld [vmem:[%s182 + $0x160] sm:$0x3]
        %v230 = vld [vmem:[%s182 + $0x168] sm:$0xff]
        %v231 = vld [vmem:[%s182 + $0x170] sm:$0xff]
        %v232 = vld [vmem:[%s182 + $0x178] sm:$0x3]
        %v233 = vld [vmem:[%s182 + $0x180] sm:$0xff]
        %v234 = vld [vmem:[%s182 + $0x188] sm:$0xff]
        %v235 = vld [vmem:[%s182 + $0x190] sm:$0x3]
        %v236 = vld [vmem:[%s182 + $0x198] sm:$0xff]
        %v237 = vld [vmem:[%s182 + $0x1a0] sm:$0xff]
        %v238 = vld [vmem:[%s182 + $0x1a8] sm:$0x3]
        %v239 = vpack.c.bf16 %v186, %v185
        %v240 = vpack.c.bf16 %v189, %v188
        %v241 = vpack.c.bf16 %v192, %v191
        %v242 = vpack.c.bf16 %v195, %v194
        %v243 = vpack.c.bf16 %v198, %v197
        %v244 = vpack.c.bf16 %v201, %v200
        %v245 = vpack.c.bf16 %v204, %v203
        %v246 = vpack.c.bf16 %v207, %v206
        %v247 = vpack.c.bf16 %v210, %v209
        %v248 = vpack.c.bf16 %v213, %v212
        %v249 = vpack.c.bf16 %v216, %v215
        %v250 = vpack.c.bf16 %v219, %v218
        %v251 = vpack.c.bf16 %v222, %v221
        %v252 = vpack.c.bf16 %v225, %v224
        %v253 = vpack.c.bf16 %v228, %v227
        %v254 = vpack.c.bf16 %v231, %v230
        %v255 = vld [vmem:[%s1] sm:$0x7]
        %vm304 = vcmask 1046528
        %v305 = vrot.slane %v185, 1
        %v306 = vrot.slane %v186, 1
        %v307 = vsel %vm304, %v305, %v306
        %v308 = vrot.slane %v187, 1
        %v309 = vsel %vm304, %v306, %v308
        %v310 = vrot.slane %v188, 1
        %v311 = vrot.slane %v189, 1
        %v312 = vsel %vm304, %v310, %v311
        %v313 = vrot.slane %v190, 1
        %v314 = vsel %vm304, %v311, %v313
        %v315 = vrot.slane %v191, 1
        %v316 = vrot.slane %v192, 1
        %v317 = vsel %vm304, %v315, %v316
        %v318 = vrot.slane %v193, 1
        %v319 = vsel %vm304, %v316, %v318
        %v320 = vrot.slane %v194, 1
        %v321 = vrot.slane %v195, 1
        %v322 = vsel %vm304, %v320, %v321
        %v323 = vrot.slane %v196, 1
        %v324 = vsel %vm304, %v321, %v323
        %v325 = vrot.slane %v197, 1
        %v326 = vrot.slane %v198, 1
        %v327 = vsel %vm304, %v325, %v326
        %v328 = vrot.slane %v199, 1
        %v329 = vsel %vm304, %v326, %v328
        %v330 = vrot.slane %v200, 1
        %v331 = vrot.slane %v201, 1
        %v332 = vsel %vm304, %v330, %v331
        %v333 = vrot.slane %v202, 1
        %v334 = vsel %vm304, %v331, %v333
        %v335 = vrot.slane %v203, 1
        %v336 = vrot.slane %v204, 1
        %v337 = vsel %vm304, %v335, %v336
        %v338 = vrot.slane %v205, 1
        %v339 = vsel %vm304, %v336, %v338
        %v340 = vrot.slane %v206, 1
        %v341 = vrot.slane %v207, 1
        %v342 = vsel %vm304, %v340, %v341
        %v343 = vrot.slane %v208, 1
        %v344 = vsel %vm304, %v341, %v343
        %v345 = vrot.slane %v209, 1
        %v346 = vrot.slane %v210, 1
        %v347 = vsel %vm304, %v345, %v346
        %v348 = vrot.slane %v211, 1
        %v349 = vsel %vm304, %v346, %v348
        %v350 = vrot.slane %v212, 1
        %v351 = vrot.slane %v213, 1
        %v352 = vsel %vm304, %v350, %v351
        %v353 = vrot.slane %v214, 1
        %v354 = vsel %vm304, %v351, %v353
        %v355 = vrot.slane %v215, 1
        %v356 = vrot.slane %v216, 1
        %v357 = vsel %vm304, %v355, %v356
        %v358 = vrot.slane %v217, 1
        %v359 = vsel %vm304, %v356, %v358
        %v360 = vrot.slane %v218, 1
        %v361 = vrot.slane %v219, 1
        %v362 = vsel %vm304, %v360, %v361
        %v363 = vrot.slane %v220, 1
        %v364 = vsel %vm304, %v361, %v363
        %v365 = vrot.slane %v221, 1
        %v366 = vrot.slane %v222, 1
        %v367 = vsel %vm304, %v365, %v366
        %v368 = vrot.slane %v223, 1
        %v369 = vsel %vm304, %v366, %v368
        %v370 = vrot.slane %v224, 1
        %v371 = vrot.slane %v225, 1
        %v372 = vsel %vm304, %v370, %v371
        %v373 = vrot.slane %v226, 1
        %v374 = vsel %vm304, %v371, %v373
        %v375 = vrot.slane %v227, 1
        %v376 = vrot.slane %v228, 1
        %v377 = vsel %vm304, %v375, %v376
        %v378 = vrot.slane %v229, 1
        %v379 = vsel %vm304, %v376, %v378
        %v380 = vrot.slane %v230, 1
        %v381 = vrot.slane %v231, 1
        %v382 = vsel %vm304, %v380, %v381
        %v383 = vrot.slane %v232, 1
        %v384 = vsel %vm304, %v381, %v383
        %v417 = vpack.c.bf16 %v309, %v307
        %v418 = vpack.c.bf16 %v314, %v312
        %v419 = vpack.c.bf16 %v319, %v317
        %v420 = vpack.c.bf16 %v324, %v322
        %v421 = vpack.c.bf16 %v329, %v327
        %v422 = vpack.c.bf16 %v334, %v332
        %v423 = vpack.c.bf16 %v339, %v337
        %v424 = vpack.c.bf16 %v344, %v342
        %v425 = vpack.c.bf16 %v349, %v347
        %v426 = vpack.c.bf16 %v354, %v352
        %v427 = vpack.c.bf16 %v359, %v357
        %v428 = vpack.c.bf16 %v364, %v362
        %v429 = vpack.c.bf16 %v369, %v367
        %v430 = vpack.c.bf16 %v374, %v372
        %v431 = vpack.c.bf16 %v379, %v377
        %v432 = vpack.c.bf16 %v384, %v382
        %v433 = vld [vmem:[%s1] sm:$0x8]
        %v434 = vld [vmem:[%s1 + $0x4] sm:$0x3]
        %v437 = vunpack.c.l.b16 %v433
        %v438 = vunpack.c.l.b16 %v434
        %v439 = vpack.c.b16 %v438, %v437
        %v440 = vrot.slane %v439, 3
        %vm441 = vcmask 48128
        %v443 = vsel %vm441, %v417, 0
        %v446 = vsel %vm441, %v418, 0
        %v449 = vsel %vm441, %v419, 0
        %v452 = vsel %vm441, %v420, 0
        %v455 = vsel %vm441, %v421, 0
        %v458 = vsel %vm441, %v422, 0
        %v461 = vsel %vm441, %v423, 0
        %v464 = vsel %vm441, %v424, 0
        %v467 = vsel %vm441, %v425, 0
        %v470 = vsel %vm441, %v426, 0
        %v473 = vsel %vm441, %v427, 0
        %v476 = vsel %vm441, %v428, 0
        %v479 = vsel %vm441, %v429, 0
        %v482 = vsel %vm441, %v430, 0
        %v485 = vsel %vm441, %v431, 0
        %v488 = vsel %vm441, %v432, 0
        %vm490 = vcmask 1042432
        %v492 = vsel %vm490, %v440, 0
        %494 = vmatprep.subr.bf16.mxu0 0
        %495 = vmatpush1.bf16.msra.mxu0 0
        %496 = vmatprep.subr.bf16.mxu0 0
        %497 = vmatpush1.bf16.msra.mxu0 0
        %498 = vmatprep.subr.bf16.mxu0 0
        %499 = vmatpush1.bf16.msra.mxu0 0
        %500 = vmatprep.subr.bf16.mxu0 0
        %501 = vmatpush1.bf16.msra.mxu0 0
        %502 = vmatprep.subr.bf16.mxu0 0
        %503 = vmatpush1.bf16.msra.mxu0 0
        %504 = vmatprep.subr.bf16.mxu0 0
        %505 = vmatpush1.bf16.msra.mxu0 0
        %506 = vmatprep.subr.bf16.mxu0 0
        %507 = vmatpush1.bf16.msra.mxu0 0
        %508 = vmatprep.subr.bf16.mxu0 0
        %509 = vmatpush1.bf16.msra.mxu0 %v492
        %510 = vmatprep.subr.bf16.mxu0 0
        %511 = vmatpush2.bf16.msra.mxu0 0
        %512 = vmatprep.subr.bf16.mxu0 0
        %513 = vmatpush2.bf16.msra.mxu0 0
        %514 = vmatprep.subr.bf16.mxu0 0
        %515 = vmatpush2.bf16.msra.mxu0 0
        %516 = vmatprep.subr.bf16.mxu0 0
        %517 = vmatpush2.bf16.msra.mxu0 0
        %518 = vmatprep.subr.bf16.mxu0 0
        %519 = vmatpush2.bf16.msra.mxu0 0
        %520 = vmatprep.subr.bf16.mxu0 0
        %521 = vmatpush2.bf16.msra.mxu0 0
        %522 = vmatprep.subr.bf16.mxu0 0
        %523 = vmatpush2.bf16.msra.mxu0 0
        %524 = vmatprep.subr.bf16.mxu0 0
        %525 = vmatpush2.bf16.msra.mxu0 0
        %526 = vmatprep.mubr.bf16.mxu0 0
        %527 = vmatmul.mubr.bf16.gmra.mxu0 %v443
        %v528 = vpop.f32.mrf.mxu0
        %v529 = vadd.f32 0.0, %v528
        %v530 = vpop.f32.mrf.mxu0
        %v531 = vpop.f32.mrf.mxu0
        %v532 = vadd.f32 0.0, %v531
        %v533 = vpop.f32.mrf.mxu0
        %534 = vmatprep.mubr.bf16.mxu0 0
        %535 = vmatmul.mubr.bf16.gmra.mxu0 %v446
        %v536 = vpop.f32.mrf.mxu0
        %v537 = vadd.f32 0.0, %v536
        %v538 = vpop.f32.mrf.mxu0
        %v539 = vpop.f32.mrf.mxu0
        %v540 = vadd.f32 0.0, %v539
        %v541 = vpop.f32.mrf.mxu0
        %542 = vmatprep.mubr.bf16.mxu0 0
        %543 = vmatmul.mubr.bf16.gmra.mxu0 %v449
        %v544 = vpop.f32.mrf.mxu0
        %v545 = vadd.f32 0.0, %v544
        %v546 = vpop.f32.mrf.mxu0
        %v547 = vpop.f32.mrf.mxu0
        %v548 = vadd.f32 0.0, %v547
        %v549 = vpop.f32.mrf.mxu0
        %550 = vmatprep.mubr.bf16.mxu0 0
        %551 = vmatmul.mubr.bf16.gmra.mxu0 %v452
        %v552 = vpop.f32.mrf.mxu0
        %v553 = vadd.f32 0.0, %v552
        %v554 = vpop.f32.mrf.mxu0
        %v555 = vpop.f32.mrf.mxu0
        %v556 = vadd.f32 0.0, %v555
        %v557 = vpop.f32.mrf.mxu0
        %558 = vmatprep.mubr.bf16.mxu0 0
        %559 = vmatmul.mubr.bf16.gmra.mxu0 %v455
        %v560 = vpop.f32.mrf.mxu0
        %v561 = vadd.f32 0.0, %v560
        %v562 = vpop.f32.mrf.mxu0
        %v563 = vpop.f32.mrf.mxu0
        %v564 = vadd.f32 0.0, %v563
        %v565 = vpop.f32.mrf.mxu0
        %566 = vmatprep.mubr.bf16.mxu0 0
        %567 = vmatmul.mubr.bf16.gmra.mxu0 %v458
        %v568 = vpop.f32.mrf.mxu0
        %v569 = vadd.f32 0.0, %v568
        %v570 = vpop.f32.mrf.mxu0
        %v571 = vpop.f32.mrf.mxu0
        %v572 = vadd.f32 0.0, %v571
        %v573 = vpop.f32.mrf.mxu0
        %574 = vmatprep.mubr.bf16.mxu0 0
        %575 = vmatmul.mubr.bf16.gmra.mxu0 %v461
        %v576 = vpop.f32.mrf.mxu0
        %v577 = vadd.f32 0.0, %v576
        %v578 = vpop.f32.mrf.mxu0
        %v579 = vpop.f32.mrf.mxu0
        %v580 = vadd.f32 0.0, %v579
        %v581 = vpop.f32.mrf.mxu0
        %582 = vmatprep.mubr.bf16.mxu0 0
        %583 = vmatmul.mubr.bf16.gmra.mxu0 %v464
        %v584 = vpop.f32.mrf.mxu0
        %v585 = vadd.f32 0.0, %v584
        %v586 = vpop.f32.mrf.mxu0
        %v587 = vpop.f32.mrf.mxu0
        %v588 = vadd.f32 0.0, %v587
        %v589 = vpop.f32.mrf.mxu0
        %590 = vmatprep.mubr.bf16.mxu0 0
        %591 = vmatmul.mubr.bf16.gmra.mxu0 %v467
        %v592 = vpop.f32.mrf.mxu0
        %v593 = vadd.f32 0.0, %v592
        %v594 = vpop.f32.mrf.mxu0
        %v595 = vpop.f32.mrf.mxu0
        %v596 = vadd.f32 0.0, %v595
        %v597 = vpop.f32.mrf.mxu0
        %598 = vmatprep.mubr.bf16.mxu0 0
        %599 = vmatmul.mubr.bf16.gmra.mxu0 %v470
        %v600 = vpop.f32.mrf.mxu0
        %v601 = vadd.f32 0.0, %v600
        %v602 = vpop.f32.mrf.mxu0
        %v603 = vpop.f32.mrf.mxu0
        %v604 = vadd.f32 0.0, %v603
        %v605 = vpop.f32.mrf.mxu0
        %606 = vmatprep.mubr.bf16.mxu0 0
        %607 = vmatmul.mubr.bf16.gmra.mxu0 %v473
        %v608 = vpop.f32.mrf.mxu0
        %v609 = vadd.f32 0.0, %v608
        %v610 = vpop.f32.mrf.mxu0
        %v611 = vpop.f32.mrf.mxu0
        %v612 = vadd.f32 0.0, %v611
        %v613 = vpop.f32.mrf.mxu0
        %614 = vmatprep.mubr.bf16.mxu0 0
        %615 = vmatmul.mubr.bf16.gmra.mxu0 %v476
        %v616 = vpop.f32.mrf.mxu0
        %v617 = vadd.f32 0.0, %v616
        %v618 = vpop.f32.mrf.mxu0
        %v619 = vpop.f32.mrf.mxu0
        %v620 = vadd.f32 0.0, %v619
        %v621 = vpop.f32.mrf.mxu0
        %622 = vmatprep.mubr.bf16.mxu0 0
        %623 = vmatmul.mubr.bf16.gmra.mxu0 %v479
        %v624 = vpop.f32.mrf.mxu0
        %v625 = vadd.f32 0.0, %v624
        %v626 = vpop.f32.mrf.mxu0
        %v627 = vpop.f32.mrf.mxu0
        %v628 = vadd.f32 0.0, %v627
        %v629 = vpop.f32.mrf.mxu0
        %630 = vmatprep.mubr.bf16.mxu0 0
        %631 = vmatmul.mubr.bf16.gmra.mxu0 %v482
        %v632 = vpop.f32.mrf.mxu0
        %v633 = vadd.f32 0.0, %v632
        %v634 = vpop.f32.mrf.mxu0
        %v635 = vpop.f32.mrf.mxu0
        %v636 = vadd.f32 0.0, %v635
        %v637 = vpop.f32.mrf.mxu0
        %638 = vmatprep.mubr.bf16.mxu0 0
        %639 = vmatmul.mubr.bf16.gmra.mxu0 %v485
        %v640 = vpop.f32.mrf.mxu0
        %v641 = vadd.f32 0.0, %v640
        %v642 = vpop.f32.mrf.mxu0
        %v643 = vpop.f32.mrf.mxu0
        %v644 = vadd.f32 0.0, %v643
        %v645 = vpop.f32.mrf.mxu0
        %646 = vmatprep.mubr.bf16.mxu0 0
        %647 = vmatmul.mubr.bf16.gmra.mxu0 %v488
        %v648 = vpop.f32.mrf.mxu0
        %v649 = vadd.f32 0.0, %v648
        %v650 = vpop.f32.mrf.mxu0
        %v651 = vpop.f32.mrf.mxu0
        %v652 = vadd.f32 0.0, %v651
        %v653 = vpop.f32.mrf.mxu0
        %654 = vdwg.mxu0
        %v656 = vsel %vm441, %v239, 0
        %v659 = vsel %vm441, %v240, 0
        %v662 = vsel %vm441, %v241, 0
        %v665 = vsel %vm441, %v242, 0
        %v668 = vsel %vm441, %v243, 0
        %v671 = vsel %vm441, %v244, 0
        %v674 = vsel %vm441, %v245, 0
        %v677 = vsel %vm441, %v246, 0
        %v680 = vsel %vm441, %v247, 0
        %v683 = vsel %vm441, %v248, 0
        %v686 = vsel %vm441, %v249, 0
        %v689 = vsel %vm441, %v250, 0
        %v692 = vsel %vm441, %v251, 0
        %v695 = vsel %vm441, %v252, 0
        %v698 = vsel %vm441, %v253, 0
        %v701 = vsel %vm441, %v254, 0
        %v704 = vsel %vm490, %v255, 0
        %706 = vmatprep.subr.bf16.mxu0 0
        %707 = vmatpush1.bf16.msra.mxu0 0
        %708 = vmatprep.subr.bf16.mxu0 0
        %709 = vmatpush1.bf16.msra.mxu0 0
        %710 = vmatprep.subr.bf16.mxu0 0
        %711 = vmatpush1.bf16.msra.mxu0 0
        %712 = vmatprep.subr.bf16.mxu0 0
        %713 = vmatpush1.bf16.msra.mxu0 0
        %714 = vmatprep.subr.bf16.mxu0 0
        %715 = vmatpush1.bf16.msra.mxu0 0
        %716 = vmatprep.subr.bf16.mxu0 0
        %717 = vmatpush1.bf16.msra.mxu0 0
        %718 = vmatprep.subr.bf16.mxu0 0
        %719 = vmatpush1.bf16.msra.mxu0 0
        %720 = vmatprep.subr.bf16.mxu0 0
        %721 = vmatpush1.bf16.msra.mxu0 %v704
        %722 = vmatprep.subr.bf16.mxu0 0
        %723 = vmatpush2.bf16.msra.mxu0 0
        %724 = vmatprep.subr.bf16.mxu0 0
        %725 = vmatpush2.bf16.msra.mxu0 0
        %726 = vmatprep.subr.bf16.mxu0 0
        %727 = vmatpush2.bf16.msra.mxu0 0
        %728 = vmatprep.subr.bf16.mxu0 0
        %729 = vmatpush2.bf16.msra.mxu0 0
        %730 = vmatprep.subr.bf16.mxu0 0
        %731 = vmatpush2.bf16.msra.mxu0 0
        %732 = vmatprep.subr.bf16.mxu0 0
        %733 = vmatpush2.bf16.msra.mxu0 0
        %734 = vmatprep.subr.bf16.mxu0 0
        %735 = vmatpush2.bf16.msra.mxu0 0
        %736 = vmatprep.subr.bf16.mxu0 0
        %737 = vmatpush2.bf16.msra.mxu0 0
        %738 = vmatprep.mubr.bf16.mxu0 0
        %739 = vmatmul.mubr.bf16.gmra.mxu0 %v656
        %v740 = vpop.f32.mrf.mxu0
        %v741 = vadd.f32 %v529, %v740
        %v742 = vpop.f32.mrf.mxu0
        %v743 = vpop.f32.mrf.mxu0
        %v744 = vadd.f32 %v532, %v743
        %v745 = vpop.f32.mrf.mxu0
        %746 = vmatprep.mubr.bf16.mxu0 0
        %747 = vmatmul.mubr.bf16.gmra.mxu0 %v659
        %v748 = vpop.f32.mrf.mxu0
        %v749 = vadd.f32 %v537, %v748
        %v750 = vpop.f32.mrf.mxu0
        %v751 = vpop.f32.mrf.mxu0
        %v752 = vadd.f32 %v540, %v751
        %v753 = vpop.f32.mrf.mxu0
        %754 = vmatprep.mubr.bf16.mxu0 0
        %755 = vmatmul.mubr.bf16.gmra.mxu0 %v662
        %v756 = vpop.f32.mrf.mxu0
        %v757 = vadd.f32 %v545, %v756
        %v758 = vpop.f32.mrf.mxu0
        %v759 = vpop.f32.mrf.mxu0
        %v760 = vadd.f32 %v548, %v759
        %v761 = vpop.f32.mrf.mxu0
        %762 = vmatprep.mubr.bf16.mxu0 0
        %763 = vmatmul.mubr.bf16.gmra.mxu0 %v665
        %v764 = vpop.f32.mrf.mxu0
        %v765 = vadd.f32 %v553, %v764
        %v766 = vpop.f32.mrf.mxu0
        %v767 = vpop.f32.mrf.mxu0
        %v768 = vadd.f32 %v556, %v767
        %v769 = vpop.f32.mrf.mxu0
        %770 = vmatprep.mubr.bf16.mxu0 0
        %771 = vmatmul.mubr.bf16.gmra.mxu0 %v668
        %v772 = vpop.f32.mrf.mxu0
        %v773 = vadd.f32 %v561, %v772
        %v774 = vpop.f32.mrf.mxu0
        %v775 = vpop.f32.mrf.mxu0
        %v776 = vadd.f32 %v564, %v775
        %v777 = vpop.f32.mrf.mxu0
        %778 = vmatprep.mubr.bf16.mxu0 0
        %779 = vmatmul.mubr.bf16.gmra.mxu0 %v671
        %v780 = vpop.f32.mrf.mxu0
        %v781 = vadd.f32 %v569, %v780
        %v782 = vpop.f32.mrf.mxu0
        %v783 = vpop.f32.mrf.mxu0
        %v784 = vadd.f32 %v572, %v783
        %v785 = vpop.f32.mrf.mxu0
        %786 = vmatprep.mubr.bf16.mxu0 0
        %787 = vmatmul.mubr.bf16.gmra.mxu0 %v674
        %v788 = vpop.f32.mrf.mxu0
        %v789 = vadd.f32 %v577, %v788
        %v790 = vpop.f32.mrf.mxu0
        %v791 = vpop.f32.mrf.mxu0
        %v792 = vadd.f32 %v580, %v791
        %v793 = vpop.f32.mrf.mxu0
        %794 = vmatprep.mubr.bf16.mxu0 0
        %795 = vmatmul.mubr.bf16.gmra.mxu0 %v677
        %v796 = vpop.f32.mrf.mxu0
        %v797 = vadd.f32 %v585, %v796
        %v798 = vpop.f32.mrf.mxu0
        %v799 = vpop.f32.mrf.mxu0
        %v800 = vadd.f32 %v588, %v799
        %v801 = vpop.f32.mrf.mxu0
        %802 = vmatprep.mubr.bf16.mxu0 0
        %803 = vmatmul.mubr.bf16.gmra.mxu0 %v680
        %v804 = vpop.f32.mrf.mxu0
        %v805 = vadd.f32 %v593, %v804
        %v806 = vpop.f32.mrf.mxu0
        %v807 = vpop.f32.mrf.mxu0
        %v808 = vadd.f32 %v596, %v807
        %v809 = vpop.f32.mrf.mxu0
        %810 = vmatprep.mubr.bf16.mxu0 0
        %811 = vmatmul.mubr.bf16.gmra.mxu0 %v683
        %v812 = vpop.f32.mrf.mxu0
        %v813 = vadd.f32 %v601, %v812
        %v814 = vpop.f32.mrf.mxu0
        %v815 = vpop.f32.mrf.mxu0
        %v816 = vadd.f32 %v604, %v815
        %v817 = vpop.f32.mrf.mxu0
        %818 = vmatprep.mubr.bf16.mxu0 0
        %819 = vmatmul.mubr.bf16.gmra.mxu0 %v686
        %v820 = vpop.f32.mrf.mxu0
        %v821 = vadd.f32 %v609, %v820
        %v822 = vpop.f32.mrf.mxu0
        %v823 = vpop.f32.mrf.mxu0
        %v824 = vadd.f32 %v612, %v823
        %v825 = vpop.f32.mrf.mxu0
        %826 = vmatprep.mubr.bf16.mxu0 0
        %827 = vmatmul.mubr.bf16.gmra.mxu0 %v689
        %v828 = vpop.f32.mrf.mxu0
        %v829 = vadd.f32 %v617, %v828
        %v830 = vpop.f32.mrf.mxu0
        %v831 = vpop.f32.mrf.mxu0
        %v832 = vadd.f32 %v620, %v831
        %v833 = vpop.f32.mrf.mxu0
        %834 = vmatprep.mubr.bf16.mxu0 0
        %835 = vmatmul.mubr.bf16.gmra.mxu0 %v692
        %v836 = vpop.f32.mrf.mxu0
        %v837 = vadd.f32 %v625, %v836
        %v838 = vpop.f32.mrf.mxu0
        %v839 = vpop.f32.mrf.mxu0
        %v840 = vadd.f32 %v628, %v839
        %v841 = vpop.f32.mrf.mxu0
        %842 = vmatprep.mubr.bf16.mxu0 0
        %843 = vmatmul.mubr.bf16.gmra.mxu0 %v695
        %v844 = vpop.f32.mrf.mxu0
        %v845 = vadd.f32 %v633, %v844
        %v846 = vpop.f32.mrf.mxu0
        %v847 = vpop.f32.mrf.mxu0
        %v848 = vadd.f32 %v636, %v847
        %v849 = vpop.f32.mrf.mxu0
        %850 = vmatprep.mubr.bf16.mxu0 0
        %851 = vmatmul.mubr.bf16.gmra.mxu0 %v698
        %v852 = vpop.f32.mrf.mxu0
        %v853 = vadd.f32 %v641, %v852
        %v854 = vpop.f32.mrf.mxu0
        %v855 = vpop.f32.mrf.mxu0
        %v856 = vadd.f32 %v644, %v855
        %v857 = vpop.f32.mrf.mxu0
        %858 = vmatprep.mubr.bf16.mxu0 0
        %859 = vmatmul.mubr.bf16.gmra.mxu0 %v701
        %v860 = vpop.f32.mrf.mxu0
        %v861 = vadd.f32 %v649, %v860
        %v862 = vpop.f32.mrf.mxu0
        %v863 = vpop.f32.mrf.mxu0
        %v864 = vadd.f32 %v652, %v863
        %v865 = vpop.f32.mrf.mxu0
        %866 = vdwg.mxu0
        %vm867 = vcmask 1045504
        %v868 = vrot.slane %v185, 2
        %v869 = vrot.slane %v186, 2
        %v870 = vsel %vm867, %v868, %v869
        %v871 = vrot.slane %v187, 2
        %v872 = vsel %vm867, %v869, %v871
        %v873 = vrot.slane %v188, 2
        %v874 = vrot.slane %v189, 2
        %v875 = vsel %vm867, %v873, %v874
        %v876 = vrot.slane %v190, 2
        %v877 = vsel %vm867, %v874, %v876
        %v878 = vrot.slane %v191, 2
        %v879 = vrot.slane %v192, 2
        %v880 = vsel %vm867, %v878, %v879
        %v881 = vrot.slane %v193, 2
        %v882 = vsel %vm867, %v879, %v881
        %v883 = vrot.slane %v194, 2
        %v884 = vrot.slane %v195, 2
        %v885 = vsel %vm867, %v883, %v884
        %v886 = vrot.slane %v196, 2
        %v887 = vsel %vm867, %v884, %v886
        %v888 = vrot.slane %v197, 2
        %v889 = vrot.slane %v198, 2
        %v890 = vsel %vm867, %v888, %v889
        %v891 = vrot.slane %v199, 2
        %v892 = vsel %vm867, %v889, %v891
        %v893 = vrot.slane %v200, 2
        %v894 = vrot.slane %v201, 2
        %v895 = vsel %vm867, %v893, %v894
        %v896 = vrot.slane %v202, 2
        %v897 = vsel %vm867, %v894, %v896
        %v898 = vrot.slane %v203, 2
        %v899 = vrot.slane %v204, 2
        %v900 = vsel %vm867, %v898, %v899
        %v901 = vrot.slane %v205, 2
        %v902 = vsel %vm867, %v899, %v901
        %v903 = vrot.slane %v206, 2
        %v904 = vrot.slane %v207, 2
        %v905 = vsel %vm867, %v903, %v904
        %v906 = vrot.slane %v208, 2
        %v907 = vsel %vm867, %v904, %v906
        %v908 = vrot.slane %v209, 2
        %v909 = vrot.slane %v210, 2
        %v910 = vsel %vm867, %v908, %v909
        %v911 = vrot.slane %v211, 2
        %v912 = vsel %vm867, %v909, %v911
        %v913 = vrot.slane %v212, 2
        %v914 = vrot.slane %v213, 2
        %v915 = vsel %vm867, %v913, %v914
        %v916 = vrot.slane %v214, 2
        %v917 = vsel %vm867, %v914, %v916
        %v918 = vrot.slane %v215, 2
        %v919 = vrot.slane %v216, 2
        %v920 = vsel %vm867, %v918, %v919
        %v921 = vrot.slane %v217, 2
        %v922 = vsel %vm867, %v919, %v921
        %v923 = vrot.slane %v218, 2
        %v924 = vrot.slane %v219, 2
        %v925 = vsel %vm867, %v923, %v924
        %v926 = vrot.slane %v220, 2
        %v927 = vsel %vm867, %v924, %v926
        %v928 = vrot.slane %v221, 2
        %v929 = vrot.slane %v222, 2
        %v930 = vsel %vm867, %v928, %v929
        %v931 = vrot.slane %v223, 2
        %v932 = vsel %vm867, %v929, %v931
        %v933 = vrot.slane %v224, 2
        %v934 = vrot.slane %v225, 2
        %v935 = vsel %vm867, %v933, %v934
        %v936 = vrot.slane %v226, 2
        %v937 = vsel %vm867, %v934, %v936
        %v938 = vrot.slane %v227, 2
        %v939 = vrot.slane %v228, 2
        %v940 = vsel %vm867, %v938, %v939
        %v941 = vrot.slane %v229, 2
        %v942 = vsel %vm867, %v939, %v941
        %v943 = vrot.slane %v230, 2
        %v944 = vrot.slane %v231, 2
        %v945 = vsel %vm867, %v943, %v944
        %v946 = vrot.slane %v232, 2
        %v947 = vsel %vm867, %v944, %v946
        %v980 = vpack.c.bf16 %v872, %v870
        %v981 = vpack.c.bf16 %v877, %v875
        %v982 = vpack.c.bf16 %v882, %v880
        %v983 = vpack.c.bf16 %v887, %v885
        %v984 = vpack.c.bf16 %v892, %v890
        %v985 = vpack.c.bf16 %v897, %v895
        %v986 = vpack.c.bf16 %v902, %v900
        %v987 = vpack.c.bf16 %v907, %v905
        %v988 = vpack.c.bf16 %v912, %v910
        %v989 = vpack.c.bf16 %v917, %v915
        %v990 = vpack.c.bf16 %v922, %v920
        %v991 = vpack.c.bf16 %v927, %v925
        %v992 = vpack.c.bf16 %v932, %v930
        %v993 = vpack.c.bf16 %v937, %v935
        %v994 = vpack.c.bf16 %v942, %v940
        %v995 = vpack.c.bf16 %v947, %v945
        %v996 = vld [vmem:[%s1 + $0x4] sm:$0xc]
        %v997 = vld [vmem:[%s1 + $0x8] sm:$0x1]
        %v1000 = vunpack.c.l.b16 %v996
        %v1001 = vunpack.c.l.b16 %v997
        %v1002 = vpack.c.b16 %v1001, %v1000
        %v1003 = vrot.slane %v1002, 2
        %v1005 = vsel %vm441, %v980, 0
        %v1008 = vsel %vm441, %v981, 0
        %v1011 = vsel %vm441, %v982, 0
        %v1014 = vsel %vm441, %v983, 0
        %v1017 = vsel %vm441, %v984, 0
        %v1020 = vsel %vm441, %v985, 0
        %v1023 = vsel %vm441, %v986, 0
        %v1026 = vsel %vm441, %v987, 0
        %v1029 = vsel %vm441, %v988, 0
        %v1032 = vsel %vm441, %v989, 0
        %v1035 = vsel %vm441, %v990, 0
        %v1038 = vsel %vm441, %v991, 0
        %v1041 = vsel %vm441, %v992, 0
        %v1044 = vsel %vm441, %v993, 0
        %v1047 = vsel %vm441, %v994, 0
        %v1050 = vsel %vm441, %v995, 0
        %v1053 = vsel %vm490, %v1003, 0
        %1055 = vmatprep.subr.bf16.mxu0 0
        %1056 = vmatpush1.bf16.msra.mxu0 0
        %1057 = vmatprep.subr.bf16.mxu0 0
        %1058 = vmatpush1.bf16.msra.mxu0 0
        %1059 = vmatprep.subr.bf16.mxu0 0
        %1060 = vmatpush1.bf16.msra.mxu0 0
        %1061 = vmatprep.subr.bf16.mxu0 0
        %1062 = vmatpush1.bf16.msra.mxu0 0
        %1063 = vmatprep.subr.bf16.mxu0 0
        %1064 = vmatpush1.bf16.msra.mxu0 0
        %1065 = vmatprep.subr.bf16.mxu0 0
        %1066 = vmatpush1.bf16.msra.mxu0 0
        %1067 = vmatprep.subr.bf16.mxu0 0
        %1068 = vmatpush1.bf16.msra.mxu0 0
        %1069 = vmatprep.subr.bf16.mxu0 0
        %1070 = vmatpush1.bf16.msra.mxu0 %v1053
        %1071 = vmatprep.subr.bf16.mxu0 0
        %1072 = vmatpush2.bf16.msra.mxu0 0
        %1073 = vmatprep.subr.bf16.mxu0 0
        %1074 = vmatpush2.bf16.msra.mxu0 0
        %1075 = vmatprep.subr.bf16.mxu0 0
        %1076 = vmatpush2.bf16.msra.mxu0 0
        %1077 = vmatprep.subr.bf16.mxu0 0
        %1078 = vmatpush2.bf16.msra.mxu0 0
        %1079 = vmatprep.subr.bf16.mxu0 0
        %1080 = vmatpush2.bf16.msra.mxu0 0
        %1081 = vmatprep.subr.bf16.mxu0 0
        %1082 = vmatpush2.bf16.msra.mxu0 0
        %1083 = vmatprep.subr.bf16.mxu0 0
        %1084 = vmatpush2.bf16.msra.mxu0 0
        %1085 = vmatprep.subr.bf16.mxu0 0
        %1086 = vmatpush2.bf16.msra.mxu0 0
        %1087 = vmatprep.mubr.bf16.mxu0 0
        %1088 = vmatmul.mubr.bf16.gmra.mxu0 %v1005
        %v1089 = vpop.f32.mrf.mxu0
        %v1090 = vadd.f32 0.0, %v1089
        %v1091 = vpop.f32.mrf.mxu0
        %v1092 = vpop.f32.mrf.mxu0
        %v1093 = vadd.f32 0.0, %v1092
        %v1094 = vpop.f32.mrf.mxu0
        %1095 = vmatprep.mubr.bf16.mxu0 0
        %1096 = vmatmul.mubr.bf16.gmra.mxu0 %v1008
        %v1097 = vpop.f32.mrf.mxu0
        %v1098 = vadd.f32 0.0, %v1097
        %v1099 = vpop.f32.mrf.mxu0
        %v1100 = vpop.f32.mrf.mxu0
        %v1101 = vadd.f32 0.0, %v1100
        %v1102 = vpop.f32.mrf.mxu0
        %1103 = vmatprep.mubr.bf16.mxu0 0
        %1104 = vmatmul.mubr.bf16.gmra.mxu0 %v1011
        %v1105 = vpop.f32.mrf.mxu0
        %v1106 = vadd.f32 0.0, %v1105
        %v1107 = vpop.f32.mrf.mxu0
        %v1108 = vpop.f32.mrf.mxu0
        %v1109 = vadd.f32 0.0, %v1108
        %v1110 = vpop.f32.mrf.mxu0
        %1111 = vmatprep.mubr.bf16.mxu0 0
        %1112 = vmatmul.mubr.bf16.gmra.mxu0 %v1014
        %v1113 = vpop.f32.mrf.mxu0
        %v1114 = vadd.f32 0.0, %v1113
        %v1115 = vpop.f32.mrf.mxu0
        %v1116 = vpop.f32.mrf.mxu0
        %v1117 = vadd.f32 0.0, %v1116
        %v1118 = vpop.f32.mrf.mxu0
        %1119 = vmatprep.mubr.bf16.mxu0 0
        %1120 = vmatmul.mubr.bf16.gmra.mxu0 %v1017
        %v1121 = vpop.f32.mrf.mxu0
        %v1122 = vadd.f32 0.0, %v1121
        %v1123 = vpop.f32.mrf.mxu0
        %v1124 = vpop.f32.mrf.mxu0
        %v1125 = vadd.f32 0.0, %v1124
        %v1126 = vpop.f32.mrf.mxu0
        %1127 = vmatprep.mubr.bf16.mxu0 0
        %1128 = vmatmul.mubr.bf16.gmra.mxu0 %v1020
        %v1129 = vpop.f32.mrf.mxu0
        %v1130 = vadd.f32 0.0, %v1129
        %v1131 = vpop.f32.mrf.mxu0
        %v1132 = vpop.f32.mrf.mxu0
        %v1133 = vadd.f32 0.0, %v1132
        %v1134 = vpop.f32.mrf.mxu0
        %1135 = vmatprep.mubr.bf16.mxu0 0
        %1136 = vmatmul.mubr.bf16.gmra.mxu0 %v1023
        %v1137 = vpop.f32.mrf.mxu0
        %v1138 = vadd.f32 0.0, %v1137
        %v1139 = vpop.f32.mrf.mxu0
        %v1140 = vpop.f32.mrf.mxu0
        %v1141 = vadd.f32 0.0, %v1140
        %v1142 = vpop.f32.mrf.mxu0
        %1143 = vmatprep.mubr.bf16.mxu0 0
        %1144 = vmatmul.mubr.bf16.gmra.mxu0 %v1026
        %v1145 = vpop.f32.mrf.mxu0
        %v1146 = vadd.f32 0.0, %v1145
        %v1147 = vpop.f32.mrf.mxu0
        %v1148 = vpop.f32.mrf.mxu0
        %v1149 = vadd.f32 0.0, %v1148
        %v1150 = vpop.f32.mrf.mxu0
        %1151 = vmatprep.mubr.bf16.mxu0 0
        %1152 = vmatmul.mubr.bf16.gmra.mxu0 %v1029
        %v1153 = vpop.f32.mrf.mxu0
        %v1154 = vadd.f32 0.0, %v1153
        %v1155 = vpop.f32.mrf.mxu0
        %v1156 = vpop.f32.mrf.mxu0
        %v1157 = vadd.f32 0.0, %v1156
        %v1158 = vpop.f32.mrf.mxu0
        %1159 = vmatprep.mubr.bf16.mxu0 0
        %1160 = vmatmul.mubr.bf16.gmra.mxu0 %v1032
        %v1161 = vpop.f32.mrf.mxu0
        %v1162 = vadd.f32 0.0, %v1161
        %v1163 = vpop.f32.mrf.mxu0
        %v1164 = vpop.f32.mrf.mxu0
        %v1165 = vadd.f32 0.0, %v1164
        %v1166 = vpop.f32.mrf.mxu0
        %1167 = vmatprep.mubr.bf16.mxu0 0
        %1168 = vmatmul.mubr.bf16.gmra.mxu0 %v1035
        %v1169 = vpop.f32.mrf.mxu0
        %v1170 = vadd.f32 0.0, %v1169
        %v1171 = vpop.f32.mrf.mxu0
        %v1172 = vpop.f32.mrf.mxu0
        %v1173 = vadd.f32 0.0, %v1172
        %v1174 = vpop.f32.mrf.mxu0
        %1175 = vmatprep.mubr.bf16.mxu0 0
        %1176 = vmatmul.mubr.bf16.gmra.mxu0 %v1038
        %v1177 = vpop.f32.mrf.mxu0
        %v1178 = vadd.f32 0.0, %v1177
        %v1179 = vpop.f32.mrf.mxu0
        %v1180 = vpop.f32.mrf.mxu0
        %v1181 = vadd.f32 0.0, %v1180
        %v1182 = vpop.f32.mrf.mxu0
        %1183 = vmatprep.mubr.bf16.mxu0 0
        %1184 = vmatmul.mubr.bf16.gmra.mxu0 %v1041
        %v1185 = vpop.f32.mrf.mxu0
        %v1186 = vadd.f32 0.0, %v1185
        %v1187 = vpop.f32.mrf.mxu0
        %v1188 = vpop.f32.mrf.mxu0
        %v1189 = vadd.f32 0.0, %v1188
        %v1190 = vpop.f32.mrf.mxu0
        %1191 = vmatprep.mubr.bf16.mxu0 0
        %1192 = vmatmul.mubr.bf16.gmra.mxu0 %v1044
        %v1193 = vpop.f32.mrf.mxu0
        %v1194 = vadd.f32 0.0, %v1193
        %v1195 = vpop.f32.mrf.mxu0
        %v1196 = vpop.f32.mrf.mxu0
        %v1197 = vadd.f32 0.0, %v1196
        %v1198 = vpop.f32.mrf.mxu0
        %1199 = vmatprep.mubr.bf16.mxu0 0
        %1200 = vmatmul.mubr.bf16.gmra.mxu0 %v1047
        %v1201 = vpop.f32.mrf.mxu0
        %v1202 = vadd.f32 0.0, %v1201
        %v1203 = vpop.f32.mrf.mxu0
        %v1204 = vpop.f32.mrf.mxu0
        %v1205 = vadd.f32 0.0, %v1204
        %v1206 = vpop.f32.mrf.mxu0
        %1207 = vmatprep.mubr.bf16.mxu0 0
        %1208 = vmatmul.mubr.bf16.gmra.mxu0 %v1050
        %v1209 = vpop.f32.mrf.mxu0
        %v1210 = vadd.f32 0.0, %v1209
        %v1211 = vpop.f32.mrf.mxu0
        %v1212 = vpop.f32.mrf.mxu0
        %v1213 = vadd.f32 0.0, %v1212
        %v1214 = vpop.f32.mrf.mxu0
        %1215 = vdwg.mxu0
        %v1216 = vadd.f32 %v741, %v1090
        %v1217 = vadd.f32 %v744, %v1093
        %v1218 = vadd.f32 %v749, %v1098
        %v1219 = vadd.f32 %v752, %v1101
        %v1220 = vadd.f32 %v757, %v1106
        %v1221 = vadd.f32 %v760, %v1109
        %v1222 = vadd.f32 %v765, %v1114
        %v1223 = vadd.f32 %v768, %v1117
        %v1224 = vadd.f32 %v773, %v1122
        %v1225 = vadd.f32 %v776, %v1125
        %v1226 = vadd.f32 %v781, %v1130
        %v1227 = vadd.f32 %v784, %v1133
        %v1228 = vadd.f32 %v789, %v1138
        %v1229 = vadd.f32 %v792, %v1141
        %v1230 = vadd.f32 %v797, %v1146
        %v1231 = vadd.f32 %v800, %v1149
        %v1232 = vadd.f32 %v805, %v1154
        %v1233 = vadd.f32 %v808, %v1157
        %v1234 = vadd.f32 %v813, %v1162
        %v1235 = vadd.f32 %v816, %v1165
        %v1236 = vadd.f32 %v821, %v1170
        %v1237 = vadd.f32 %v824, %v1173
        %v1238 = vadd.f32 %v829, %v1178
        %v1239 = vadd.f32 %v832, %v1181
        %v1240 = vadd.f32 %v837, %v1186
        %v1241 = vadd.f32 %v840, %v1189
        %v1242 = vadd.f32 %v845, %v1194
        %v1243 = vadd.f32 %v848, %v1197
        %v1244 = vadd.f32 %v853, %v1202
        %v1245 = vadd.f32 %v856, %v1205
        %v1246 = vadd.f32 %v861, %v1210
        %v1247 = vadd.f32 %v864, %v1213
        %v1248 = vpack.c.bf16 %v234, %v233
        %s1249 = scalar_lea.vmem %s1, 12
        %v1250 = vld [vmem:[%s1249] sm:$0x7]
        %v1252 = vsel %vm441, %v1248, 0
        %v1255 = vsel %vm490, %v1250, 0
        %1257 = vmatprep.subr.bf16.mxu0 0
        %1258 = vmatpush1.bf16.msra.mxu0 0
        %1259 = vmatprep.subr.bf16.mxu0 0
        %1260 = vmatpush1.bf16.msra.mxu0 0
        %1261 = vmatprep.subr.bf16.mxu0 0
        %1262 = vmatpush1.bf16.msra.mxu0 0
        %1263 = vmatprep.subr.bf16.mxu0 0
        %1264 = vmatpush1.bf16.msra.mxu0 0
        %1265 = vmatprep.subr.bf16.mxu0 0
        %1266 = vmatpush1.bf16.msra.mxu0 0
        %1267 = vmatprep.subr.bf16.mxu0 0
        %1268 = vmatpush1.bf16.msra.mxu0 0
        %1269 = vmatprep.subr.bf16.mxu0 0
        %1270 = vmatpush1.bf16.msra.mxu0 0
        %1271 = vmatprep.subr.bf16.mxu0 0
        %1272 = vmatpush1.bf16.msra.mxu0 %v1255
        %1273 = vmatprep.subr.bf16.mxu0 0
        %1274 = vmatpush2.bf16.msra.mxu0 0
        %1275 = vmatprep.subr.bf16.mxu0 0
        %1276 = vmatpush2.bf16.msra.mxu0 0
        %1277 = vmatprep.subr.bf16.mxu0 0
        %1278 = vmatpush2.bf16.msra.mxu0 0
        %1279 = vmatprep.subr.bf16.mxu0 0
        %1280 = vmatpush2.bf16.msra.mxu0 0
        %1281 = vmatprep.subr.bf16.mxu0 0
        %1282 = vmatpush2.bf16.msra.mxu0 0
        %1283 = vmatprep.subr.bf16.mxu0 0
        %1284 = vmatpush2.bf16.msra.mxu0 0
        %1285 = vmatprep.subr.bf16.mxu0 0
        %1286 = vmatpush2.bf16.msra.mxu0 0
        %1287 = vmatprep.subr.bf16.mxu0 0
        %1288 = vmatpush2.bf16.msra.mxu0 0
        %1289 = vmatprep.mubr.bf16.mxu0 0
        %1290 = vmatmul.mubr.bf16.gmra.mxu0 %v659
        %v1291 = vpop.f32.mrf.mxu0
        %v1292 = vadd.f32 0.0, %v1291
        %v1293 = vpop.f32.mrf.mxu0
        %v1294 = vpop.f32.mrf.mxu0
        %v1295 = vadd.f32 0.0, %v1294
        %v1296 = vpop.f32.mrf.mxu0
        %1297 = vmatprep.mubr.bf16.mxu0 0
        %1298 = vmatmul.mubr.bf16.gmra.mxu0 %v662
        %v1299 = vpop.f32.mrf.mxu0
        %v1300 = vadd.f32 0.0, %v1299
        %v1301 = vpop.f32.mrf.mxu0
        %v1302 = vpop.f32.mrf.mxu0
        %v1303 = vadd.f32 0.0, %v1302
        %v1304 = vpop.f32.mrf.mxu0
        %1305 = vmatprep.mubr.bf16.mxu0 0
        %1306 = vmatmul.mubr.bf16.gmra.mxu0 %v665
        %v1307 = vpop.f32.mrf.mxu0
        %v1308 = vadd.f32 0.0, %v1307
        %v1309 = vpop.f32.mrf.mxu0
        %v1310 = vpop.f32.mrf.mxu0
        %v1311 = vadd.f32 0.0, %v1310
        %v1312 = vpop.f32.mrf.mxu0
        %1313 = vmatprep.mubr.bf16.mxu0 0
        %1314 = vmatmul.mubr.bf16.gmra.mxu0 %v668
        %v1315 = vpop.f32.mrf.mxu0
        %v1316 = vadd.f32 0.0, %v1315
        %v1317 = vpop.f32.mrf.mxu0
        %v1318 = vpop.f32.mrf.mxu0
        %v1319 = vadd.f32 0.0, %v1318
        %v1320 = vpop.f32.mrf.mxu0
        %1321 = vmatprep.mubr.bf16.mxu0 0
        %1322 = vmatmul.mubr.bf16.gmra.mxu0 %v671
        %v1323 = vpop.f32.mrf.mxu0
        %v1324 = vadd.f32 0.0, %v1323
        %v1325 = vpop.f32.mrf.mxu0
        %v1326 = vpop.f32.mrf.mxu0
        %v1327 = vadd.f32 0.0, %v1326
        %v1328 = vpop.f32.mrf.mxu0
        %1329 = vmatprep.mubr.bf16.mxu0 0
        %1330 = vmatmul.mubr.bf16.gmra.mxu0 %v674
        %v1331 = vpop.f32.mrf.mxu0
        %v1332 = vadd.f32 0.0, %v1331
        %v1333 = vpop.f32.mrf.mxu0
        %v1334 = vpop.f32.mrf.mxu0
        %v1335 = vadd.f32 0.0, %v1334
        %v1336 = vpop.f32.mrf.mxu0
        %1337 = vmatprep.mubr.bf16.mxu0 0
        %1338 = vmatmul.mubr.bf16.gmra.mxu0 %v677
        %v1339 = vpop.f32.mrf.mxu0
        %v1340 = vadd.f32 0.0, %v1339
        %v1341 = vpop.f32.mrf.mxu0
        %v1342 = vpop.f32.mrf.mxu0
        %v1343 = vadd.f32 0.0, %v1342
        %v1344 = vpop.f32.mrf.mxu0
        %1345 = vmatprep.mubr.bf16.mxu0 0
        %1346 = vmatmul.mubr.bf16.gmra.mxu0 %v680
        %v1347 = vpop.f32.mrf.mxu0
        %v1348 = vadd.f32 0.0, %v1347
        %v1349 = vpop.f32.mrf.mxu0
        %v1350 = vpop.f32.mrf.mxu0
        %v1351 = vadd.f32 0.0, %v1350
        %v1352 = vpop.f32.mrf.mxu0
        %1353 = vmatprep.mubr.bf16.mxu0 0
        %1354 = vmatmul.mubr.bf16.gmra.mxu0 %v683
        %v1355 = vpop.f32.mrf.mxu0
        %v1356 = vadd.f32 0.0, %v1355
        %v1357 = vpop.f32.mrf.mxu0
        %v1358 = vpop.f32.mrf.mxu0
        %v1359 = vadd.f32 0.0, %v1358
        %v1360 = vpop.f32.mrf.mxu0
        %1361 = vmatprep.mubr.bf16.mxu0 0
        %1362 = vmatmul.mubr.bf16.gmra.mxu0 %v686
        %v1363 = vpop.f32.mrf.mxu0
        %v1364 = vadd.f32 0.0, %v1363
        %v1365 = vpop.f32.mrf.mxu0
        %v1366 = vpop.f32.mrf.mxu0
        %v1367 = vadd.f32 0.0, %v1366
        %v1368 = vpop.f32.mrf.mxu0
        %1369 = vmatprep.mubr.bf16.mxu0 0
        %1370 = vmatmul.mubr.bf16.gmra.mxu0 %v689
        %v1371 = vpop.f32.mrf.mxu0
        %v1372 = vadd.f32 0.0, %v1371
        %v1373 = vpop.f32.mrf.mxu0
        %v1374 = vpop.f32.mrf.mxu0
        %v1375 = vadd.f32 0.0, %v1374
        %v1376 = vpop.f32.mrf.mxu0
        %1377 = vmatprep.mubr.bf16.mxu0 0
        %1378 = vmatmul.mubr.bf16.gmra.mxu0 %v692
        %v1379 = vpop.f32.mrf.mxu0
        %v1380 = vadd.f32 0.0, %v1379
        %v1381 = vpop.f32.mrf.mxu0
        %v1382 = vpop.f32.mrf.mxu0
        %v1383 = vadd.f32 0.0, %v1382
        %v1384 = vpop.f32.mrf.mxu0
        %1385 = vmatprep.mubr.bf16.mxu0 0
        %1386 = vmatmul.mubr.bf16.gmra.mxu0 %v695
        %v1387 = vpop.f32.mrf.mxu0
        %v1388 = vadd.f32 0.0, %v1387
        %v1389 = vpop.f32.mrf.mxu0
        %v1390 = vpop.f32.mrf.mxu0
        %v1391 = vadd.f32 0.0, %v1390
        %v1392 = vpop.f32.mrf.mxu0
        %1393 = vmatprep.mubr.bf16.mxu0 0
        %1394 = vmatmul.mubr.bf16.gmra.mxu0 %v698
        %v1395 = vpop.f32.mrf.mxu0
        %v1396 = vadd.f32 0.0, %v1395
        %v1397 = vpop.f32.mrf.mxu0
        %v1398 = vpop.f32.mrf.mxu0
        %v1399 = vadd.f32 0.0, %v1398
        %v1400 = vpop.f32.mrf.mxu0
        %1401 = vmatprep.mubr.bf16.mxu0 0
        %1402 = vmatmul.mubr.bf16.gmra.mxu0 %v701
        %v1403 = vpop.f32.mrf.mxu0
        %v1404 = vadd.f32 0.0, %v1403
        %v1405 = vpop.f32.mrf.mxu0
        %v1406 = vpop.f32.mrf.mxu0
        %v1407 = vadd.f32 0.0, %v1406
        %v1408 = vpop.f32.mrf.mxu0
        %1409 = vmatprep.mubr.bf16.mxu0 0
        %1410 = vmatmul.mubr.bf16.gmra.mxu0 %v1252
        %v1411 = vpop.f32.mrf.mxu0
        %v1412 = vadd.f32 0.0, %v1411
        %v1413 = vpop.f32.mrf.mxu0
        %v1414 = vpop.f32.mrf.mxu0
        %v1415 = vadd.f32 0.0, %v1414
        %v1416 = vpop.f32.mrf.mxu0
        %1417 = vdwg.mxu0
        %v1418 = vadd.f32 %v1216, %v1292
        %v1419 = vadd.f32 %v1217, %v1295
        %v1420 = vadd.f32 %v1218, %v1300
        %v1421 = vadd.f32 %v1219, %v1303
        %v1422 = vadd.f32 %v1220, %v1308
        %v1423 = vadd.f32 %v1221, %v1311
        %v1424 = vadd.f32 %v1222, %v1316
        %v1425 = vadd.f32 %v1223, %v1319
        %v1426 = vadd.f32 %v1224, %v1324
        %v1427 = vadd.f32 %v1225, %v1327
        %v1428 = vadd.f32 %v1226, %v1332
        %v1429 = vadd.f32 %v1227, %v1335
        %v1430 = vadd.f32 %v1228, %v1340
        %v1431 = vadd.f32 %v1229, %v1343
        %v1432 = vadd.f32 %v1230, %v1348
        %v1433 = vadd.f32 %v1231, %v1351
        %v1434 = vadd.f32 %v1232, %v1356
        %v1435 = vadd.f32 %v1233, %v1359
        %v1436 = vadd.f32 %v1234, %v1364
        %v1437 = vadd.f32 %v1235, %v1367
        %v1438 = vadd.f32 %v1236, %v1372
        %v1439 = vadd.f32 %v1237, %v1375
        %v1440 = vadd.f32 %v1238, %v1380
        %v1441 = vadd.f32 %v1239, %v1383
        %v1442 = vadd.f32 %v1240, %v1388
        %v1443 = vadd.f32 %v1241, %v1391
        %v1444 = vadd.f32 %v1242, %v1396
        %v1445 = vadd.f32 %v1243, %v1399
        %v1446 = vadd.f32 %v1244, %v1404
        %v1447 = vadd.f32 %v1245, %v1407
        %v1448 = vadd.f32 %v1246, %v1412
        %v1449 = vadd.f32 %v1247, %v1415
        %v1453 = vrot.slane %v233, 1
        %v1454 = vrot.slane %v234, 1
        %v1455 = vsel %vm304, %v1453, %v1454
        %v1456 = vrot.slane %v235, 1
        %v1457 = vsel %vm304, %v1454, %v1456
        %v1460 = vpack.c.bf16 %v1457, %v1455
        %v1461 = vld [vmem:[%s1249] sm:$0x8]
        %v1462 = vld [vmem:[%s1249 + $0x4] sm:$0x3]
        %v1465 = vunpack.c.l.b16 %v1461
        %v1466 = vunpack.c.l.b16 %v1462
        %v1467 = vpack.c.b16 %v1466, %v1465
        %v1468 = vrot.slane %v1467, 3
        %v1470 = vsel %vm441, %v1460, 0
        %v1473 = vsel %vm490, %v1468, 0
        %1475 = vmatprep.subr.bf16.mxu0 0
        %1476 = vmatpush1.bf16.msra.mxu0 0
        %1477 = vmatprep.subr.bf16.mxu0 0
        %1478 = vmatpush1.bf16.msra.mxu0 0
        %1479 = vmatprep.subr.bf16.mxu0 0
        %1480 = vmatpush1.bf16.msra.mxu0 0
        %1481 = vmatprep.subr.bf16.mxu0 0
        %1482 = vmatpush1.bf16.msra.mxu0 0
        %1483 = vmatprep.subr.bf16.mxu0 0
        %1484 = vmatpush1.bf16.msra.mxu0 0
        %1485 = vmatprep.subr.bf16.mxu0 0
        %1486 = vmatpush1.bf16.msra.mxu0 0
        %1487 = vmatprep.subr.bf16.mxu0 0
        %1488 = vmatpush1.bf16.msra.mxu0 0
        %1489 = vmatprep.subr.bf16.mxu0 0
        %1490 = vmatpush1.bf16.msra.mxu0 %v1473
        %1491 = vmatprep.subr.bf16.mxu0 0
        %1492 = vmatpush2.bf16.msra.mxu0 0
        %1493 = vmatprep.subr.bf16.mxu0 0
        %1494 = vmatpush2.bf16.msra.mxu0 0
        %1495 = vmatprep.subr.bf16.mxu0 0
        %1496 = vmatpush2.bf16.msra.mxu0 0
        %1497 = vmatprep.subr.bf16.mxu0 0
        %1498 = vmatpush2.bf16.msra.mxu0 0
        %1499 = vmatprep.subr.bf16.mxu0 0
        %1500 = vmatpush2.bf16.msra.mxu0 0
        %1501 = vmatprep.subr.bf16.mxu0 0
        %1502 = vmatpush2.bf16.msra.mxu0 0
        %1503 = vmatprep.subr.bf16.mxu0 0
        %1504 = vmatpush2.bf16.msra.mxu0 0
        %1505 = vmatprep.subr.bf16.mxu0 0
        %1506 = vmatpush2.bf16.msra.mxu0 0
        %1507 = vmatprep.mubr.bf16.mxu0 0
        %1508 = vmatmul.mubr.bf16.gmra.mxu0 %v446
        %v1509 = vpop.f32.mrf.mxu0
        %v1510 = vadd.f32 0.0, %v1509
        %v1511 = vpop.f32.mrf.mxu0
        %v1512 = vpop.f32.mrf.mxu0
        %v1513 = vadd.f32 0.0, %v1512
        %v1514 = vpop.f32.mrf.mxu0
        %1515 = vmatprep.mubr.bf16.mxu0 0
        %1516 = vmatmul.mubr.bf16.gmra.mxu0 %v449
        %v1517 = vpop.f32.mrf.mxu0
        %v1518 = vadd.f32 0.0, %v1517
        %v1519 = vpop.f32.mrf.mxu0
        %v1520 = vpop.f32.mrf.mxu0
        %v1521 = vadd.f32 0.0, %v1520
        %v1522 = vpop.f32.mrf.mxu0
        %1523 = vmatprep.mubr.bf16.mxu0 0
        %1524 = vmatmul.mubr.bf16.gmra.mxu0 %v452
        %v1525 = vpop.f32.mrf.mxu0
        %v1526 = vadd.f32 0.0, %v1525
        %v1527 = vpop.f32.mrf.mxu0
        %v1528 = vpop.f32.mrf.mxu0
        %v1529 = vadd.f32 0.0, %v1528
        %v1530 = vpop.f32.mrf.mxu0
        %1531 = vmatprep.mubr.bf16.mxu0 0
        %1532 = vmatmul.mubr.bf16.gmra.mxu0 %v455
        %v1533 = vpop.f32.mrf.mxu0
        %v1534 = vadd.f32 0.0, %v1533
        %v1535 = vpop.f32.mrf.mxu0
        %v1536 = vpop.f32.mrf.mxu0
        %v1537 = vadd.f32 0.0, %v1536
        %v1538 = vpop.f32.mrf.mxu0
        %1539 = vmatprep.mubr.bf16.mxu0 0
        %1540 = vmatmul.mubr.bf16.gmra.mxu0 %v458
        %v1541 = vpop.f32.mrf.mxu0
        %v1542 = vadd.f32 0.0, %v1541
        %v1543 = vpop.f32.mrf.mxu0
        %v1544 = vpop.f32.mrf.mxu0
        %v1545 = vadd.f32 0.0, %v1544
        %v1546 = vpop.f32.mrf.mxu0
        %1547 = vmatprep.mubr.bf16.mxu0 0
        %1548 = vmatmul.mubr.bf16.gmra.mxu0 %v461
        %v1549 = vpop.f32.mrf.mxu0
        %v1550 = vadd.f32 0.0, %v1549
        %v1551 = vpop.f32.mrf.mxu0
        %v1552 = vpop.f32.mrf.mxu0
        %v1553 = vadd.f32 0.0, %v1552
        %v1554 = vpop.f32.mrf.mxu0
        %1555 = vmatprep.mubr.bf16.mxu0 0
        %1556 = vmatmul.mubr.bf16.gmra.mxu0 %v464
        %v1557 = vpop.f32.mrf.mxu0
        %v1558 = vadd.f32 0.0, %v1557
        %v1559 = vpop.f32.mrf.mxu0
        %v1560 = vpop.f32.mrf.mxu0
        %v1561 = vadd.f32 0.0, %v1560
        %v1562 = vpop.f32.mrf.mxu0
        %1563 = vmatprep.mubr.bf16.mxu0 0
        %1564 = vmatmul.mubr.bf16.gmra.mxu0 %v467
        %v1565 = vpop.f32.mrf.mxu0
        %v1566 = vadd.f32 0.0, %v1565
        %v1567 = vpop.f32.mrf.mxu0
        %v1568 = vpop.f32.mrf.mxu0
        %v1569 = vadd.f32 0.0, %v1568
        %v1570 = vpop.f32.mrf.mxu0
        %1571 = vmatprep.mubr.bf16.mxu0 0
        %1572 = vmatmul.mubr.bf16.gmra.mxu0 %v470
        %v1573 = vpop.f32.mrf.mxu0
        %v1574 = vadd.f32 0.0, %v1573
        %v1575 = vpop.f32.mrf.mxu0
        %v1576 = vpop.f32.mrf.mxu0
        %v1577 = vadd.f32 0.0, %v1576
        %v1578 = vpop.f32.mrf.mxu0
        %1579 = vmatprep.mubr.bf16.mxu0 0
        %1580 = vmatmul.mubr.bf16.gmra.mxu0 %v473
        %v1581 = vpop.f32.mrf.mxu0
        %v1582 = vadd.f32 0.0, %v1581
        %v1583 = vpop.f32.mrf.mxu0
        %v1584 = vpop.f32.mrf.mxu0
        %v1585 = vadd.f32 0.0, %v1584
        %v1586 = vpop.f32.mrf.mxu0
        %1587 = vmatprep.mubr.bf16.mxu0 0
        %1588 = vmatmul.mubr.bf16.gmra.mxu0 %v476
        %v1589 = vpop.f32.mrf.mxu0
        %v1590 = vadd.f32 0.0, %v1589
        %v1591 = vpop.f32.mrf.mxu0
        %v1592 = vpop.f32.mrf.mxu0
        %v1593 = vadd.f32 0.0, %v1592
        %v1594 = vpop.f32.mrf.mxu0
        %1595 = vmatprep.mubr.bf16.mxu0 0
        %1596 = vmatmul.mubr.bf16.gmra.mxu0 %v479
        %v1597 = vpop.f32.mrf.mxu0
        %v1598 = vadd.f32 0.0, %v1597
        %v1599 = vpop.f32.mrf.mxu0
        %v1600 = vpop.f32.mrf.mxu0
        %v1601 = vadd.f32 0.0, %v1600
        %v1602 = vpop.f32.mrf.mxu0
        %1603 = vmatprep.mubr.bf16.mxu0 0
        %1604 = vmatmul.mubr.bf16.gmra.mxu0 %v482
        %v1605 = vpop.f32.mrf.mxu0
        %v1606 = vadd.f32 0.0, %v1605
        %v1607 = vpop.f32.mrf.mxu0
        %v1608 = vpop.f32.mrf.mxu0
        %v1609 = vadd.f32 0.0, %v1608
        %v1610 = vpop.f32.mrf.mxu0
        %1611 = vmatprep.mubr.bf16.mxu0 0
        %1612 = vmatmul.mubr.bf16.gmra.mxu0 %v485
        %v1613 = vpop.f32.mrf.mxu0
        %v1614 = vadd.f32 0.0, %v1613
        %v1615 = vpop.f32.mrf.mxu0
        %v1616 = vpop.f32.mrf.mxu0
        %v1617 = vadd.f32 0.0, %v1616
        %v1618 = vpop.f32.mrf.mxu0
        %1619 = vmatprep.mubr.bf16.mxu0 0
        %1620 = vmatmul.mubr.bf16.gmra.mxu0 %v488
        %v1621 = vpop.f32.mrf.mxu0
        %v1622 = vadd.f32 0.0, %v1621
        %v1623 = vpop.f32.mrf.mxu0
        %v1624 = vpop.f32.mrf.mxu0
        %v1625 = vadd.f32 0.0, %v1624
        %v1626 = vpop.f32.mrf.mxu0
        %1627 = vmatprep.mubr.bf16.mxu0 0
        %1628 = vmatmul.mubr.bf16.gmra.mxu0 %v1470
        %v1629 = vpop.f32.mrf.mxu0
        %v1630 = vadd.f32 0.0, %v1629
        %v1631 = vpop.f32.mrf.mxu0
        %v1632 = vpop.f32.mrf.mxu0
        %v1633 = vadd.f32 0.0, %v1632
        %v1634 = vpop.f32.mrf.mxu0
        %1635 = vdwg.mxu0
        %v1636 = vadd.f32 %v1418, %v1510
        %v1637 = vadd.f32 %v1419, %v1513
        %v1638 = vadd.f32 %v1420, %v1518
        %v1639 = vadd.f32 %v1421, %v1521
        %v1640 = vadd.f32 %v1422, %v1526
        %v1641 = vadd.f32 %v1423, %v1529
        %v1642 = vadd.f32 %v1424, %v1534
        %v1643 = vadd.f32 %v1425, %v1537
        %v1644 = vadd.f32 %v1426, %v1542
        %v1645 = vadd.f32 %v1427, %v1545
        %v1646 = vadd.f32 %v1428, %v1550
        %v1647 = vadd.f32 %v1429, %v1553
        %v1648 = vadd.f32 %v1430, %v1558
        %v1649 = vadd.f32 %v1431, %v1561
        %v1650 = vadd.f32 %v1432, %v1566
        %v1651 = vadd.f32 %v1433, %v1569
        %v1652 = vadd.f32 %v1434, %v1574
        %v1653 = vadd.f32 %v1435, %v1577
        %v1654 = vadd.f32 %v1436, %v1582
        %v1655 = vadd.f32 %v1437, %v1585
        %v1656 = vadd.f32 %v1438, %v1590
        %v1657 = vadd.f32 %v1439, %v1593
        %v1658 = vadd.f32 %v1440, %v1598
        %v1659 = vadd.f32 %v1441, %v1601
        %v1660 = vadd.f32 %v1442, %v1606
        %v1661 = vadd.f32 %v1443, %v1609
        %v1662 = vadd.f32 %v1444, %v1614
        %v1663 = vadd.f32 %v1445, %v1617
        %v1664 = vadd.f32 %v1446, %v1622
        %v1665 = vadd.f32 %v1447, %v1625
        %v1666 = vadd.f32 %v1448, %v1630
        %v1667 = vadd.f32 %v1449, %v1633
        %v1668 = vrot.slane %v233, 2
        %v1669 = vrot.slane %v234, 2
        %v1670 = vsel %vm867, %v1668, %v1669
        %v1671 = vrot.slane %v235, 2
        %v1672 = vsel %vm867, %v1669, %v1671
        %v1675 = vpack.c.bf16 %v1672, %v1670
        %v1676 = vld [vmem:[%s1249 + $0x4] sm:$0xc]
        %v1677 = vld [vmem:[%s1249 + $0x8] sm:$0x1]
        %v1680 = vunpack.c.l.b16 %v1676
        %v1681 = vunpack.c.l.b16 %v1677
        %v1682 = vpack.c.b16 %v1681, %v1680
        %v1683 = vrot.slane %v1682, 2
        %v1685 = vsel %vm441, %v1675, 0
        %v1688 = vsel %vm490, %v1683, 0
        %1690 = vmatprep.subr.bf16.mxu0 0
        %1691 = vmatpush1.bf16.msra.mxu0 0
        %1692 = vmatprep.subr.bf16.mxu0 0
        %1693 = vmatpush1.bf16.msra.mxu0 0
        %1694 = vmatprep.subr.bf16.mxu0 0
        %1695 = vmatpush1.bf16.msra.mxu0 0
        %1696 = vmatprep.subr.bf16.mxu0 0
        %1697 = vmatpush1.bf16.msra.mxu0 0
        %1698 = vmatprep.subr.bf16.mxu0 0
        %1699 = vmatpush1.bf16.msra.mxu0 0
        %1700 = vmatprep.subr.bf16.mxu0 0
        %1701 = vmatpush1.bf16.msra.mxu0 0
        %1702 = vmatprep.subr.bf16.mxu0 0
        %1703 = vmatpush1.bf16.msra.mxu0 0
        %1704 = vmatprep.subr.bf16.mxu0 0
        %1705 = vmatpush1.bf16.msra.mxu0 %v1688
        %1706 = vmatprep.subr.bf16.mxu0 0
        %1707 = vmatpush2.bf16.msra.mxu0 0
        %1708 = vmatprep.subr.bf16.mxu0 0
        %1709 = vmatpush2.bf16.msra.mxu0 0
        %1710 = vmatprep.subr.bf16.mxu0 0
        %1711 = vmatpush2.bf16.msra.mxu0 0
        %1712 = vmatprep.subr.bf16.mxu0 0
        %1713 = vmatpush2.bf16.msra.mxu0 0
        %1714 = vmatprep.subr.bf16.mxu0 0
        %1715 = vmatpush2.bf16.msra.mxu0 0
        %1716 = vmatprep.subr.bf16.mxu0 0
        %1717 = vmatpush2.bf16.msra.mxu0 0
        %1718 = vmatprep.subr.bf16.mxu0 0
        %1719 = vmatpush2.bf16.msra.mxu0 0
        %1720 = vmatprep.subr.bf16.mxu0 0
        %1721 = vmatpush2.bf16.msra.mxu0 0
        %1722 = vmatprep.mubr.bf16.mxu0 0
        %1723 = vmatmul.mubr.bf16.gmra.mxu0 %v1008
        %v1724 = vpop.f32.mrf.mxu0
        %v1725 = vadd.f32 0.0, %v1724
        %v1726 = vpop.f32.mrf.mxu0
        %v1727 = vpop.f32.mrf.mxu0
        %v1728 = vadd.f32 0.0, %v1727
        %v1729 = vpop.f32.mrf.mxu0
        %1730 = vmatprep.mubr.bf16.mxu0 0
        %1731 = vmatmul.mubr.bf16.gmra.mxu0 %v1011
        %v1732 = vpop.f32.mrf.mxu0
        %v1733 = vadd.f32 0.0, %v1732
        %v1734 = vpop.f32.mrf.mxu0
        %v1735 = vpop.f32.mrf.mxu0
        %v1736 = vadd.f32 0.0, %v1735
        %v1737 = vpop.f32.mrf.mxu0
        %1738 = vmatprep.mubr.bf16.mxu0 0
        %1739 = vmatmul.mubr.bf16.gmra.mxu0 %v1014
        %v1740 = vpop.f32.mrf.mxu0
        %v1741 = vadd.f32 0.0, %v1740
        %v1742 = vpop.f32.mrf.mxu0
        %v1743 = vpop.f32.mrf.mxu0
        %v1744 = vadd.f32 0.0, %v1743
        %v1745 = vpop.f32.mrf.mxu0
        %1746 = vmatprep.mubr.bf16.mxu0 0
        %1747 = vmatmul.mubr.bf16.gmra.mxu0 %v1017
        %v1748 = vpop.f32.mrf.mxu0
        %v1749 = vadd.f32 0.0, %v1748
        %v1750 = vpop.f32.mrf.mxu0
        %v1751 = vpop.f32.mrf.mxu0
        %v1752 = vadd.f32 0.0, %v1751
        %v1753 = vpop.f32.mrf.mxu0
        %1754 = vmatprep.mubr.bf16.mxu0 0
        %1755 = vmatmul.mubr.bf16.gmra.mxu0 %v1020
        %v1756 = vpop.f32.mrf.mxu0
        %v1757 = vadd.f32 0.0, %v1756
        %v1758 = vpop.f32.mrf.mxu0
        %v1759 = vpop.f32.mrf.mxu0
        %v1760 = vadd.f32 0.0, %v1759
        %v1761 = vpop.f32.mrf.mxu0
        %1762 = vmatprep.mubr.bf16.mxu0 0
        %1763 = vmatmul.mubr.bf16.gmra.mxu0 %v1023
        %v1764 = vpop.f32.mrf.mxu0
        %v1765 = vadd.f32 0.0, %v1764
        %v1766 = vpop.f32.mrf.mxu0
        %v1767 = vpop.f32.mrf.mxu0
        %v1768 = vadd.f32 0.0, %v1767
        %v1769 = vpop.f32.mrf.mxu0
        %1770 = vmatprep.mubr.bf16.mxu0 0
        %1771 = vmatmul.mubr.bf16.gmra.mxu0 %v1026
        %v1772 = vpop.f32.mrf.mxu0
        %v1773 = vadd.f32 0.0, %v1772
        %v1774 = vpop.f32.mrf.mxu0
        %v1775 = vpop.f32.mrf.mxu0
        %v1776 = vadd.f32 0.0, %v1775
        %v1777 = vpop.f32.mrf.mxu0
        %1778 = vmatprep.mubr.bf16.mxu0 0
        %1779 = vmatmul.mubr.bf16.gmra.mxu0 %v1029
        %v1780 = vpop.f32.mrf.mxu0
        %v1781 = vadd.f32 0.0, %v1780
        %v1782 = vpop.f32.mrf.mxu0
        %v1783 = vpop.f32.mrf.mxu0
        %v1784 = vadd.f32 0.0, %v1783
        %v1785 = vpop.f32.mrf.mxu0
        %1786 = vmatprep.mubr.bf16.mxu0 0
        %1787 = vmatmul.mubr.bf16.gmra.mxu0 %v1032
        %v1788 = vpop.f32.mrf.mxu0
        %v1789 = vadd.f32 0.0, %v1788
        %v1790 = vpop.f32.mrf.mxu0
        %v1791 = vpop.f32.mrf.mxu0
        %v1792 = vadd.f32 0.0, %v1791
        %v1793 = vpop.f32.mrf.mxu0
        %1794 = vmatprep.mubr.bf16.mxu0 0
        %1795 = vmatmul.mubr.bf16.gmra.mxu0 %v1035
        %v1796 = vpop.f32.mrf.mxu0
        %v1797 = vadd.f32 0.0, %v1796
        %v1798 = vpop.f32.mrf.mxu0
        %v1799 = vpop.f32.mrf.mxu0
        %v1800 = vadd.f32 0.0, %v1799
        %v1801 = vpop.f32.mrf.mxu0
        %1802 = vmatprep.mubr.bf16.mxu0 0
        %1803 = vmatmul.mubr.bf16.gmra.mxu0 %v1038
        %v1804 = vpop.f32.mrf.mxu0
        %v1805 = vadd.f32 0.0, %v1804
        %v1806 = vpop.f32.mrf.mxu0
        %v1807 = vpop.f32.mrf.mxu0
        %v1808 = vadd.f32 0.0, %v1807
        %v1809 = vpop.f32.mrf.mxu0
        %1810 = vmatprep.mubr.bf16.mxu0 0
        %1811 = vmatmul.mubr.bf16.gmra.mxu0 %v1041
        %v1812 = vpop.f32.mrf.mxu0
        %v1813 = vadd.f32 0.0, %v1812
        %v1814 = vpop.f32.mrf.mxu0
        %v1815 = vpop.f32.mrf.mxu0
        %v1816 = vadd.f32 0.0, %v1815
        %v1817 = vpop.f32.mrf.mxu0
        %1818 = vmatprep.mubr.bf16.mxu0 0
        %1819 = vmatmul.mubr.bf16.gmra.mxu0 %v1044
        %v1820 = vpop.f32.mrf.mxu0
        %v1821 = vadd.f32 0.0, %v1820
        %v1822 = vpop.f32.mrf.mxu0
        %v1823 = vpop.f32.mrf.mxu0
        %v1824 = vadd.f32 0.0, %v1823
        %v1825 = vpop.f32.mrf.mxu0
        %1826 = vmatprep.mubr.bf16.mxu0 0
        %1827 = vmatmul.mubr.bf16.gmra.mxu0 %v1047
        %v1828 = vpop.f32.mrf.mxu0
        %v1829 = vadd.f32 0.0, %v1828
        %v1830 = vpop.f32.mrf.mxu0
        %v1831 = vpop.f32.mrf.mxu0
        %v1832 = vadd.f32 0.0, %v1831
        %v1833 = vpop.f32.mrf.mxu0
        %1834 = vmatprep.mubr.bf16.mxu0 0
        %1835 = vmatmul.mubr.bf16.gmra.mxu0 %v1050
        %v1836 = vpop.f32.mrf.mxu0
        %v1837 = vadd.f32 0.0, %v1836
        %v1838 = vpop.f32.mrf.mxu0
        %v1839 = vpop.f32.mrf.mxu0
        %v1840 = vadd.f32 0.0, %v1839
        %v1841 = vpop.f32.mrf.mxu0
        %1842 = vmatprep.mubr.bf16.mxu0 0
        %1843 = vmatmul.mubr.bf16.gmra.mxu0 %v1685
        %v1844 = vpop.f32.mrf.mxu0
        %v1845 = vadd.f32 0.0, %v1844
        %v1846 = vpop.f32.mrf.mxu0
        %v1847 = vpop.f32.mrf.mxu0
        %v1848 = vadd.f32 0.0, %v1847
        %v1849 = vpop.f32.mrf.mxu0
        %1850 = vdwg.mxu0
        %v1851 = vadd.f32 %v1636, %v1725
        %v1852 = vadd.f32 %v1637, %v1728
        %v1853 = vadd.f32 %v1638, %v1733
        %v1854 = vadd.f32 %v1639, %v1736
        %v1855 = vadd.f32 %v1640, %v1741
        %v1856 = vadd.f32 %v1641, %v1744
        %v1857 = vadd.f32 %v1642, %v1749
        %v1858 = vadd.f32 %v1643, %v1752
        %v1859 = vadd.f32 %v1644, %v1757
        %v1860 = vadd.f32 %v1645, %v1760
        %v1861 = vadd.f32 %v1646, %v1765
        %v1862 = vadd.f32 %v1647, %v1768
        %v1863 = vadd.f32 %v1648, %v1773
        %v1864 = vadd.f32 %v1649, %v1776
        %v1865 = vadd.f32 %v1650, %v1781
        %v1866 = vadd.f32 %v1651, %v1784
        %v1867 = vadd.f32 %v1652, %v1789
        %v1868 = vadd.f32 %v1653, %v1792
        %v1869 = vadd.f32 %v1654, %v1797
        %v1870 = vadd.f32 %v1655, %v1800
        %v1871 = vadd.f32 %v1656, %v1805
        %v1872 = vadd.f32 %v1657, %v1808
        %v1873 = vadd.f32 %v1658, %v1813
        %v1874 = vadd.f32 %v1659, %v1816
        %v1875 = vadd.f32 %v1660, %v1821
        %v1876 = vadd.f32 %v1661, %v1824
        %v1877 = vadd.f32 %v1662, %v1829
        %v1878 = vadd.f32 %v1663, %v1832
        %v1879 = vadd.f32 %v1664, %v1837
        %v1880 = vadd.f32 %v1665, %v1840
        %v1881 = vadd.f32 %v1666, %v1845
        %v1882 = vadd.f32 %v1667, %v1848
        %v1883 = vpack.c.bf16 %v237, %v236
        %s1884 = scalar_lea.vmem %s1, 24
        %v1885 = vld [vmem:[%s1884] sm:$0x7]
        %v1887 = vsel %vm441, %v1883, 0
        %v1890 = vsel %vm490, %v1885, 0
        %1892 = vmatprep.subr.bf16.mxu0 0
        %1893 = vmatpush1.bf16.msra.mxu0 0
        %1894 = vmatprep.subr.bf16.mxu0 0
        %1895 = vmatpush1.bf16.msra.mxu0 0
        %1896 = vmatprep.subr.bf16.mxu0 0
        %1897 = vmatpush1.bf16.msra.mxu0 0
        %1898 = vmatprep.subr.bf16.mxu0 0
        %1899 = vmatpush1.bf16.msra.mxu0 0
        %1900 = vmatprep.subr.bf16.mxu0 0
        %1901 = vmatpush1.bf16.msra.mxu0 0
        %1902 = vmatprep.subr.bf16.mxu0 0
        %1903 = vmatpush1.bf16.msra.mxu0 0
        %1904 = vmatprep.subr.bf16.mxu0 0
        %1905 = vmatpush1.bf16.msra.mxu0 0
        %1906 = vmatprep.subr.bf16.mxu0 0
        %1907 = vmatpush1.bf16.msra.mxu0 %v1890
        %1908 = vmatprep.subr.bf16.mxu0 0
        %1909 = vmatpush2.bf16.msra.mxu0 0
        %1910 = vmatprep.subr.bf16.mxu0 0
        %1911 = vmatpush2.bf16.msra.mxu0 0
        %1912 = vmatprep.subr.bf16.mxu0 0
        %1913 = vmatpush2.bf16.msra.mxu0 0
        %1914 = vmatprep.subr.bf16.mxu0 0
        %1915 = vmatpush2.bf16.msra.mxu0 0
        %1916 = vmatprep.subr.bf16.mxu0 0
        %1917 = vmatpush2.bf16.msra.mxu0 0
        %1918 = vmatprep.subr.bf16.mxu0 0
        %1919 = vmatpush2.bf16.msra.mxu0 0
        %1920 = vmatprep.subr.bf16.mxu0 0
        %1921 = vmatpush2.bf16.msra.mxu0 0
        %1922 = vmatprep.subr.bf16.mxu0 0
        %1923 = vmatpush2.bf16.msra.mxu0 0
        %1924 = vmatprep.mubr.bf16.mxu0 0
        %1925 = vmatmul.mubr.bf16.gmra.mxu0 %v662
        %v1926 = vpop.f32.mrf.mxu0
        %v1927 = vadd.f32 0.0, %v1926
        %v1928 = vpop.f32.mrf.mxu0
        %v1929 = vpop.f32.mrf.mxu0
        %v1930 = vadd.f32 0.0, %v1929
        %v1931 = vpop.f32.mrf.mxu0
        %1932 = vmatprep.mubr.bf16.mxu0 0
        %1933 = vmatmul.mubr.bf16.gmra.mxu0 %v665
        %v1934 = vpop.f32.mrf.mxu0
        %v1935 = vadd.f32 0.0, %v1934
        %v1936 = vpop.f32.mrf.mxu0
        %v1937 = vpop.f32.mrf.mxu0
        %v1938 = vadd.f32 0.0, %v1937
        %v1939 = vpop.f32.mrf.mxu0
        %1940 = vmatprep.mubr.bf16.mxu0 0
        %1941 = vmatmul.mubr.bf16.gmra.mxu0 %v668
        %v1942 = vpop.f32.mrf.mxu0
        %v1943 = vadd.f32 0.0, %v1942
        %v1944 = vpop.f32.mrf.mxu0
        %v1945 = vpop.f32.mrf.mxu0
        %v1946 = vadd.f32 0.0, %v1945
        %v1947 = vpop.f32.mrf.mxu0
        %1948 = vmatprep.mubr.bf16.mxu0 0
        %1949 = vmatmul.mubr.bf16.gmra.mxu0 %v671
        %v1950 = vpop.f32.mrf.mxu0
        %v1951 = vadd.f32 0.0, %v1950
        %v1952 = vpop.f32.mrf.mxu0
        %v1953 = vpop.f32.mrf.mxu0
        %v1954 = vadd.f32 0.0, %v1953
        %v1955 = vpop.f32.mrf.mxu0
        %1956 = vmatprep.mubr.bf16.mxu0 0
        %1957 = vmatmul.mubr.bf16.gmra.mxu0 %v674
        %v1958 = vpop.f32.mrf.mxu0
        %v1959 = vadd.f32 0.0, %v1958
        %v1960 = vpop.f32.mrf.mxu0
        %v1961 = vpop.f32.mrf.mxu0
        %v1962 = vadd.f32 0.0, %v1961
        %v1963 = vpop.f32.mrf.mxu0
        %1964 = vmatprep.mubr.bf16.mxu0 0
        %1965 = vmatmul.mubr.bf16.gmra.mxu0 %v677
        %v1966 = vpop.f32.mrf.mxu0
        %v1967 = vadd.f32 0.0, %v1966
        %v1968 = vpop.f32.mrf.mxu0
        %v1969 = vpop.f32.mrf.mxu0
        %v1970 = vadd.f32 0.0, %v1969
        %v1971 = vpop.f32.mrf.mxu0
        %1972 = vmatprep.mubr.bf16.mxu0 0
        %1973 = vmatmul.mubr.bf16.gmra.mxu0 %v680
        %v1974 = vpop.f32.mrf.mxu0
        %v1975 = vadd.f32 0.0, %v1974
        %v1976 = vpop.f32.mrf.mxu0
        %v1977 = vpop.f32.mrf.mxu0
        %v1978 = vadd.f32 0.0, %v1977
        %v1979 = vpop.f32.mrf.mxu0
        %1980 = vmatprep.mubr.bf16.mxu0 0
        %1981 = vmatmul.mubr.bf16.gmra.mxu0 %v683
        %v1982 = vpop.f32.mrf.mxu0
        %v1983 = vadd.f32 0.0, %v1982
        %v1984 = vpop.f32.mrf.mxu0
        %v1985 = vpop.f32.mrf.mxu0
        %v1986 = vadd.f32 0.0, %v1985
        %v1987 = vpop.f32.mrf.mxu0
        %1988 = vmatprep.mubr.bf16.mxu0 0
        %1989 = vmatmul.mubr.bf16.gmra.mxu0 %v686
        %v1990 = vpop.f32.mrf.mxu0
        %v1991 = vadd.f32 0.0, %v1990
        %v1992 = vpop.f32.mrf.mxu0
        %v1993 = vpop.f32.mrf.mxu0
        %v1994 = vadd.f32 0.0, %v1993
        %v1995 = vpop.f32.mrf.mxu0
        %1996 = vmatprep.mubr.bf16.mxu0 0
        %1997 = vmatmul.mubr.bf16.gmra.mxu0 %v689
        %v1998 = vpop.f32.mrf.mxu0
        %v1999 = vadd.f32 0.0, %v1998
        %v2000 = vpop.f32.mrf.mxu0
        %v2001 = vpop.f32.mrf.mxu0
        %v2002 = vadd.f32 0.0, %v2001
        %v2003 = vpop.f32.mrf.mxu0
        %2004 = vmatprep.mubr.bf16.mxu0 0
        %2005 = vmatmul.mubr.bf16.gmra.mxu0 %v692
        %v2006 = vpop.f32.mrf.mxu0
        %v2007 = vadd.f32 0.0, %v2006
        %v2008 = vpop.f32.mrf.mxu0
        %v2009 = vpop.f32.mrf.mxu0
        %v2010 = vadd.f32 0.0, %v2009
        %v2011 = vpop.f32.mrf.mxu0
        %2012 = vmatprep.mubr.bf16.mxu0 0
        %2013 = vmatmul.mubr.bf16.gmra.mxu0 %v695
        %v2014 = vpop.f32.mrf.mxu0
        %v2015 = vadd.f32 0.0, %v2014
        %v2016 = vpop.f32.mrf.mxu0
        %v2017 = vpop.f32.mrf.mxu0
        %v2018 = vadd.f32 0.0, %v2017
        %v2019 = vpop.f32.mrf.mxu0
        %2020 = vmatprep.mubr.bf16.mxu0 0
        %2021 = vmatmul.mubr.bf16.gmra.mxu0 %v698
        %v2022 = vpop.f32.mrf.mxu0
        %v2023 = vadd.f32 0.0, %v2022
        %v2024 = vpop.f32.mrf.mxu0
        %v2025 = vpop.f32.mrf.mxu0
        %v2026 = vadd.f32 0.0, %v2025
        %v2027 = vpop.f32.mrf.mxu0
        %2028 = vmatprep.mubr.bf16.mxu0 0
        %2029 = vmatmul.mubr.bf16.gmra.mxu0 %v701
        %v2030 = vpop.f32.mrf.mxu0
        %v2031 = vadd.f32 0.0, %v2030
        %v2032 = vpop.f32.mrf.mxu0
        %v2033 = vpop.f32.mrf.mxu0
        %v2034 = vadd.f32 0.0, %v2033
        %v2035 = vpop.f32.mrf.mxu0
        %2036 = vmatprep.mubr.bf16.mxu0 0
        %2037 = vmatmul.mubr.bf16.gmra.mxu0 %v1252
        %v2038 = vpop.f32.mrf.mxu0
        %v2039 = vadd.f32 0.0, %v2038
        %v2040 = vpop.f32.mrf.mxu0
        %v2041 = vpop.f32.mrf.mxu0
        %v2042 = vadd.f32 0.0, %v2041
        %v2043 = vpop.f32.mrf.mxu0
        %2044 = vmatprep.mubr.bf16.mxu0 0
        %2045 = vmatmul.mubr.bf16.gmra.mxu0 %v1887
        %v2046 = vpop.f32.mrf.mxu0
        %v2047 = vadd.f32 0.0, %v2046
        %v2048 = vpop.f32.mrf.mxu0
        %v2049 = vpop.f32.mrf.mxu0
        %v2050 = vadd.f32 0.0, %v2049
        %v2051 = vpop.f32.mrf.mxu0
        %2052 = vdwg.mxu0
        %v2053 = vadd.f32 %v1851, %v1927
        %v2054 = vadd.f32 %v1852, %v1930
        %v2055 = vadd.f32 %v1853, %v1935
        %v2056 = vadd.f32 %v1854, %v1938
        %v2057 = vadd.f32 %v1855, %v1943
        %v2058 = vadd.f32 %v1856, %v1946
        %v2059 = vadd.f32 %v1857, %v1951
        %v2060 = vadd.f32 %v1858, %v1954
        %v2061 = vadd.f32 %v1859, %v1959
        %v2062 = vadd.f32 %v1860, %v1962
        %v2063 = vadd.f32 %v1861, %v1967
        %v2064 = vadd.f32 %v1862, %v1970
        %v2065 = vadd.f32 %v1863, %v1975
        %v2066 = vadd.f32 %v1864, %v1978
        %v2067 = vadd.f32 %v1865, %v1983
        %v2068 = vadd.f32 %v1866, %v1986
        %v2069 = vadd.f32 %v1867, %v1991
        %v2070 = vadd.f32 %v1868, %v1994
        %v2071 = vadd.f32 %v1869, %v1999
        %v2072 = vadd.f32 %v1870, %v2002
        %v2073 = vadd.f32 %v1871, %v2007
        %v2074 = vadd.f32 %v1872, %v2010
        %v2075 = vadd.f32 %v1873, %v2015
        %v2076 = vadd.f32 %v1874, %v2018
        %v2077 = vadd.f32 %v1875, %v2023
        %v2078 = vadd.f32 %v1876, %v2026
        %v2079 = vadd.f32 %v1877, %v2031
        %v2080 = vadd.f32 %v1878, %v2034
        %v2081 = vadd.f32 %v1879, %v2039
        %v2082 = vadd.f32 %v1880, %v2042
        %v2083 = vadd.f32 %v1881, %v2047
        %v2084 = vadd.f32 %v1882, %v2050
        %v2088 = vrot.slane %v236, 1
        %v2089 = vrot.slane %v237, 1
        %v2090 = vsel %vm304, %v2088, %v2089
        %v2091 = vrot.slane %v238, 1
        %v2092 = vsel %vm304, %v2089, %v2091
        %v2095 = vpack.c.bf16 %v2092, %v2090
        %v2096 = vld [vmem:[%s1884] sm:$0x8]
        %v2097 = vld [vmem:[%s1884 + $0x4] sm:$0x3]
        %v2100 = vunpack.c.l.b16 %v2096
        %v2101 = vunpack.c.l.b16 %v2097
        %v2102 = vpack.c.b16 %v2101, %v2100
        %v2103 = vrot.slane %v2102, 3
        %v2105 = vsel %vm441, %v2095, 0
        %v2108 = vsel %vm490, %v2103, 0
        %2110 = vmatprep.subr.bf16.mxu0 0
        %2111 = vmatpush1.bf16.msra.mxu0 0
        %2112 = vmatprep.subr.bf16.mxu0 0
        %2113 = vmatpush1.bf16.msra.mxu0 0
        %2114 = vmatprep.subr.bf16.mxu0 0
        %2115 = vmatpush1.bf16.msra.mxu0 0
        %2116 = vmatprep.subr.bf16.mxu0 0
        %2117 = vmatpush1.bf16.msra.mxu0 0
        %2118 = vmatprep.subr.bf16.mxu0 0
        %2119 = vmatpush1.bf16.msra.mxu0 0
        %2120 = vmatprep.subr.bf16.mxu0 0
        %2121 = vmatpush1.bf16.msra.mxu0 0
        %2122 = vmatprep.subr.bf16.mxu0 0
        %2123 = vmatpush1.bf16.msra.mxu0 0
        %2124 = vmatprep.subr.bf16.mxu0 0
        %2125 = vmatpush1.bf16.msra.mxu0 %v2108
        %2126 = vmatprep.subr.bf16.mxu0 0
        %2127 = vmatpush2.bf16.msra.mxu0 0
        %2128 = vmatprep.subr.bf16.mxu0 0
        %2129 = vmatpush2.bf16.msra.mxu0 0
        %2130 = vmatprep.subr.bf16.mxu0 0
        %2131 = vmatpush2.bf16.msra.mxu0 0
        %2132 = vmatprep.subr.bf16.mxu0 0
        %2133 = vmatpush2.bf16.msra.mxu0 0
        %2134 = vmatprep.subr.bf16.mxu0 0
        %2135 = vmatpush2.bf16.msra.mxu0 0
        %2136 = vmatprep.subr.bf16.mxu0 0
        %2137 = vmatpush2.bf16.msra.mxu0 0
        %2138 = vmatprep.subr.bf16.mxu0 0
        %2139 = vmatpush2.bf16.msra.mxu0 0
        %2140 = vmatprep.subr.bf16.mxu0 0
        %2141 = vmatpush2.bf16.msra.mxu0 0
        %2142 = vmatprep.mubr.bf16.mxu0 0
        %2143 = vmatmul.mubr.bf16.gmra.mxu0 %v449
        %v2144 = vpop.f32.mrf.mxu0
        %v2145 = vadd.f32 0.0, %v2144
        %v2146 = vpop.f32.mrf.mxu0
        %v2147 = vpop.f32.mrf.mxu0
        %v2148 = vadd.f32 0.0, %v2147
        %v2149 = vpop.f32.mrf.mxu0
        %2150 = vmatprep.mubr.bf16.mxu0 0
        %2151 = vmatmul.mubr.bf16.gmra.mxu0 %v452
        %v2152 = vpop.f32.mrf.mxu0
        %v2153 = vadd.f32 0.0, %v2152
        %v2154 = vpop.f32.mrf.mxu0
        %v2155 = vpop.f32.mrf.mxu0
        %v2156 = vadd.f32 0.0, %v2155
        %v2157 = vpop.f32.mrf.mxu0
        %2158 = vmatprep.mubr.bf16.mxu0 0
        %2159 = vmatmul.mubr.bf16.gmra.mxu0 %v455
        %v2160 = vpop.f32.mrf.mxu0
        %v2161 = vadd.f32 0.0, %v2160
        %v2162 = vpop.f32.mrf.mxu0
        %v2163 = vpop.f32.mrf.mxu0
        %v2164 = vadd.f32 0.0, %v2163
        %v2165 = vpop.f32.mrf.mxu0
        %2166 = vmatprep.mubr.bf16.mxu0 0
        %2167 = vmatmul.mubr.bf16.gmra.mxu0 %v458
        %v2168 = vpop.f32.mrf.mxu0
        %v2169 = vadd.f32 0.0, %v2168
        %v2170 = vpop.f32.mrf.mxu0
        %v2171 = vpop.f32.mrf.mxu0
        %v2172 = vadd.f32 0.0, %v2171
        %v2173 = vpop.f32.mrf.mxu0
        %2174 = vmatprep.mubr.bf16.mxu0 0
        %2175 = vmatmul.mubr.bf16.gmra.mxu0 %v461
        %v2176 = vpop.f32.mrf.mxu0
        %v2177 = vadd.f32 0.0, %v2176
        %v2178 = vpop.f32.mrf.mxu0
        %v2179 = vpop.f32.mrf.mxu0
        %v2180 = vadd.f32 0.0, %v2179
        %v2181 = vpop.f32.mrf.mxu0
        %2182 = vmatprep.mubr.bf16.mxu0 0
        %2183 = vmatmul.mubr.bf16.gmra.mxu0 %v464
        %v2184 = vpop.f32.mrf.mxu0
        %v2185 = vadd.f32 0.0, %v2184
        %v2186 = vpop.f32.mrf.mxu0
        %v2187 = vpop.f32.mrf.mxu0
        %v2188 = vadd.f32 0.0, %v2187
        %v2189 = vpop.f32.mrf.mxu0
        %2190 = vmatprep.mubr.bf16.mxu0 0
        %2191 = vmatmul.mubr.bf16.gmra.mxu0 %v467
        %v2192 = vpop.f32.mrf.mxu0
        %v2193 = vadd.f32 0.0, %v2192
        %v2194 = vpop.f32.mrf.mxu0
        %v2195 = vpop.f32.mrf.mxu0
        %v2196 = vadd.f32 0.0, %v2195
        %v2197 = vpop.f32.mrf.mxu0
        %2198 = vmatprep.mubr.bf16.mxu0 0
        %2199 = vmatmul.mubr.bf16.gmra.mxu0 %v470
        %v2200 = vpop.f32.mrf.mxu0
        %v2201 = vadd.f32 0.0, %v2200
        %v2202 = vpop.f32.mrf.mxu0
        %v2203 = vpop.f32.mrf.mxu0
        %v2204 = vadd.f32 0.0, %v2203
        %v2205 = vpop.f32.mrf.mxu0
        %2206 = vmatprep.mubr.bf16.mxu0 0
        %2207 = vmatmul.mubr.bf16.gmra.mxu0 %v473
        %v2208 = vpop.f32.mrf.mxu0
        %v2209 = vadd.f32 0.0, %v2208
        %v2210 = vpop.f32.mrf.mxu0
        %v2211 = vpop.f32.mrf.mxu0
        %v2212 = vadd.f32 0.0, %v2211
        %v2213 = vpop.f32.mrf.mxu0
        %2214 = vmatprep.mubr.bf16.mxu0 0
        %2215 = vmatmul.mubr.bf16.gmra.mxu0 %v476
        %v2216 = vpop.f32.mrf.mxu0
        %v2217 = vadd.f32 0.0, %v2216
        %v2218 = vpop.f32.mrf.mxu0
        %v2219 = vpop.f32.mrf.mxu0
        %v2220 = vadd.f32 0.0, %v2219
        %v2221 = vpop.f32.mrf.mxu0
        %2222 = vmatprep.mubr.bf16.mxu0 0
        %2223 = vmatmul.mubr.bf16.gmra.mxu0 %v479
        %v2224 = vpop.f32.mrf.mxu0
        %v2225 = vadd.f32 0.0, %v2224
        %v2226 = vpop.f32.mrf.mxu0
        %v2227 = vpop.f32.mrf.mxu0
        %v2228 = vadd.f32 0.0, %v2227
        %v2229 = vpop.f32.mrf.mxu0
        %2230 = vmatprep.mubr.bf16.mxu0 0
        %2231 = vmatmul.mubr.bf16.gmra.mxu0 %v482
        %v2232 = vpop.f32.mrf.mxu0
        %v2233 = vadd.f32 0.0, %v2232
        %v2234 = vpop.f32.mrf.mxu0
        %v2235 = vpop.f32.mrf.mxu0
        %v2236 = vadd.f32 0.0, %v2235
        %v2237 = vpop.f32.mrf.mxu0
        %2238 = vmatprep.mubr.bf16.mxu0 0
        %2239 = vmatmul.mubr.bf16.gmra.mxu0 %v485
        %v2240 = vpop.f32.mrf.mxu0
        %v2241 = vadd.f32 0.0, %v2240
        %v2242 = vpop.f32.mrf.mxu0
        %v2243 = vpop.f32.mrf.mxu0
        %v2244 = vadd.f32 0.0, %v2243
        %v2245 = vpop.f32.mrf.mxu0
        %2246 = vmatprep.mubr.bf16.mxu0 0
        %2247 = vmatmul.mubr.bf16.gmra.mxu0 %v488
        %v2248 = vpop.f32.mrf.mxu0
        %v2249 = vadd.f32 0.0, %v2248
        %v2250 = vpop.f32.mrf.mxu0
        %v2251 = vpop.f32.mrf.mxu0
        %v2252 = vadd.f32 0.0, %v2251
        %v2253 = vpop.f32.mrf.mxu0
        %2254 = vmatprep.mubr.bf16.mxu0 0
        %2255 = vmatmul.mubr.bf16.gmra.mxu0 %v1470
        %v2256 = vpop.f32.mrf.mxu0
        %v2257 = vadd.f32 0.0, %v2256
        %v2258 = vpop.f32.mrf.mxu0
        %v2259 = vpop.f32.mrf.mxu0
        %v2260 = vadd.f32 0.0, %v2259
        %v2261 = vpop.f32.mrf.mxu0
        %2262 = vmatprep.mubr.bf16.mxu0 0
        %2263 = vmatmul.mubr.bf16.gmra.mxu0 %v2105
        %v2264 = vpop.f32.mrf.mxu0
        %v2265 = vadd.f32 0.0, %v2264
        %v2266 = vpop.f32.mrf.mxu0
        %v2267 = vpop.f32.mrf.mxu0
        %v2268 = vadd.f32 0.0, %v2267
        %v2269 = vpop.f32.mrf.mxu0
        %2270 = vdwg.mxu0
        %v2271 = vadd.f32 %v2053, %v2145
        %v2272 = vadd.f32 %v2054, %v2148
        %v2273 = vadd.f32 %v2055, %v2153
        %v2274 = vadd.f32 %v2056, %v2156
        %v2275 = vadd.f32 %v2057, %v2161
        %v2276 = vadd.f32 %v2058, %v2164
        %v2277 = vadd.f32 %v2059, %v2169
        %v2278 = vadd.f32 %v2060, %v2172
        %v2279 = vadd.f32 %v2061, %v2177
        %v2280 = vadd.f32 %v2062, %v2180
        %v2281 = vadd.f32 %v2063, %v2185
        %v2282 = vadd.f32 %v2064, %v2188
        %v2283 = vadd.f32 %v2065, %v2193
        %v2284 = vadd.f32 %v2066, %v2196
        %v2285 = vadd.f32 %v2067, %v2201
        %v2286 = vadd.f32 %v2068, %v2204
        %v2287 = vadd.f32 %v2069, %v2209
        %v2288 = vadd.f32 %v2070, %v2212
        %v2289 = vadd.f32 %v2071, %v2217
        %v2290 = vadd.f32 %v2072, %v2220
        %v2291 = vadd.f32 %v2073, %v2225
        %v2292 = vadd.f32 %v2074, %v2228
        %v2293 = vadd.f32 %v2075, %v2233
        %v2294 = vadd.f32 %v2076, %v2236
        %v2295 = vadd.f32 %v2077, %v2241
        %v2296 = vadd.f32 %v2078, %v2244
        %v2297 = vadd.f32 %v2079, %v2249
        %v2298 = vadd.f32 %v2080, %v2252
        %v2299 = vadd.f32 %v2081, %v2257
        %v2300 = vadd.f32 %v2082, %v2260
        %v2301 = vadd.f32 %v2083, %v2265
        %v2302 = vadd.f32 %v2084, %v2268
        %v2303 = vrot.slane %v236, 2
        %v2304 = vrot.slane %v237, 2
        %v2305 = vsel %vm867, %v2303, %v2304
        %v2306 = vrot.slane %v238, 2
        %v2307 = vsel %vm867, %v2304, %v2306
        %v2310 = vpack.c.bf16 %v2307, %v2305
        %v2311 = vld [vmem:[%s1884 + $0x4] sm:$0xc]
        %v2312 = vld [vmem:[%s1884 + $0x8] sm:$0x1]
        %v2315 = vunpack.c.l.b16 %v2311
        %v2316 = vunpack.c.l.b16 %v2312
        %v2317 = vpack.c.b16 %v2316, %v2315
        %v2318 = vrot.slane %v2317, 2
        %v2320 = vsel %vm441, %v2310, 0
        %v2323 = vsel %vm490, %v2318, 0
        %2325 = vmatprep.subr.bf16.mxu0 0
        %2326 = vmatpush1.bf16.msra.mxu0 0
        %2327 = vmatprep.subr.bf16.mxu0 0
        %2328 = vmatpush1.bf16.msra.mxu0 0
        %2329 = vmatprep.subr.bf16.mxu0 0
        %2330 = vmatpush1.bf16.msra.mxu0 0
        %2331 = vmatprep.subr.bf16.mxu0 0
        %2332 = vmatpush1.bf16.msra.mxu0 0
        %2333 = vmatprep.subr.bf16.mxu0 0
        %2334 = vmatpush1.bf16.msra.mxu0 0
        %2335 = vmatprep.subr.bf16.mxu0 0
        %2336 = vmatpush1.bf16.msra.mxu0 0
        %2337 = vmatprep.subr.bf16.mxu0 0
        %2338 = vmatpush1.bf16.msra.mxu0 0
        %2339 = vmatprep.subr.bf16.mxu0 0
        %2340 = vmatpush1.bf16.msra.mxu0 %v2323
        %2341 = vmatprep.subr.bf16.mxu0 0
        %2342 = vmatpush2.bf16.msra.mxu0 0
        %2343 = vmatprep.subr.bf16.mxu0 0
        %2344 = vmatpush2.bf16.msra.mxu0 0
        %2345 = vmatprep.subr.bf16.mxu0 0
        %2346 = vmatpush2.bf16.msra.mxu0 0
        %2347 = vmatprep.subr.bf16.mxu0 0
        %2348 = vmatpush2.bf16.msra.mxu0 0
        %2349 = vmatprep.subr.bf16.mxu0 0
        %2350 = vmatpush2.bf16.msra.mxu0 0
        %2351 = vmatprep.subr.bf16.mxu0 0
        %2352 = vmatpush2.bf16.msra.mxu0 0
        %2353 = vmatprep.subr.bf16.mxu0 0
        %2354 = vmatpush2.bf16.msra.mxu0 0
        %2355 = vmatprep.subr.bf16.mxu0 0
        %2356 = vmatpush2.bf16.msra.mxu0 0
        %2357 = vmatprep.mubr.bf16.mxu0 0
        %2358 = vmatmul.mubr.bf16.gmra.mxu0 %v1011
        %v2359 = vpop.f32.mrf.mxu0
        %v2360 = vadd.f32 0.0, %v2359
        %v2361 = vpop.f32.mrf.mxu0
        %v2362 = vpop.f32.mrf.mxu0
        %v2363 = vadd.f32 0.0, %v2362
        %v2364 = vpop.f32.mrf.mxu0
        %2365 = vmatprep.mubr.bf16.mxu0 0
        %2366 = vmatmul.mubr.bf16.gmra.mxu0 %v1014
        %v2367 = vpop.f32.mrf.mxu0
        %v2368 = vadd.f32 0.0, %v2367
        %v2369 = vpop.f32.mrf.mxu0
        %v2370 = vpop.f32.mrf.mxu0
        %v2371 = vadd.f32 0.0, %v2370
        %v2372 = vpop.f32.mrf.mxu0
        %2373 = vmatprep.mubr.bf16.mxu0 0
        %2374 = vmatmul.mubr.bf16.gmra.mxu0 %v1017
        %v2375 = vpop.f32.mrf.mxu0
        %v2376 = vadd.f32 0.0, %v2375
        %v2377 = vpop.f32.mrf.mxu0
        %v2378 = vpop.f32.mrf.mxu0
        %v2379 = vadd.f32 0.0, %v2378
        %v2380 = vpop.f32.mrf.mxu0
        %2381 = vmatprep.mubr.bf16.mxu0 0
        %2382 = vmatmul.mubr.bf16.gmra.mxu0 %v1020
        %v2383 = vpop.f32.mrf.mxu0
        %v2384 = vadd.f32 0.0, %v2383
        %v2385 = vpop.f32.mrf.mxu0
        %v2386 = vpop.f32.mrf.mxu0
        %v2387 = vadd.f32 0.0, %v2386
        %v2388 = vpop.f32.mrf.mxu0
        %2389 = vmatprep.mubr.bf16.mxu0 0
        %2390 = vmatmul.mubr.bf16.gmra.mxu0 %v1023
        %v2391 = vpop.f32.mrf.mxu0
        %v2392 = vadd.f32 0.0, %v2391
        %v2393 = vpop.f32.mrf.mxu0
        %v2394 = vpop.f32.mrf.mxu0
        %v2395 = vadd.f32 0.0, %v2394
        %v2396 = vpop.f32.mrf.mxu0
        %2397 = vmatprep.mubr.bf16.mxu0 0
        %2398 = vmatmul.mubr.bf16.gmra.mxu0 %v1026
        %v2399 = vpop.f32.mrf.mxu0
        %v2400 = vadd.f32 0.0, %v2399
        %v2401 = vpop.f32.mrf.mxu0
        %v2402 = vpop.f32.mrf.mxu0
        %v2403 = vadd.f32 0.0, %v2402
        %v2404 = vpop.f32.mrf.mxu0
        %2405 = vmatprep.mubr.bf16.mxu0 0
        %2406 = vmatmul.mubr.bf16.gmra.mxu0 %v1029
        %v2407 = vpop.f32.mrf.mxu0
        %v2408 = vadd.f32 0.0, %v2407
        %v2409 = vpop.f32.mrf.mxu0
        %v2410 = vpop.f32.mrf.mxu0
        %v2411 = vadd.f32 0.0, %v2410
        %v2412 = vpop.f32.mrf.mxu0
        %2413 = vmatprep.mubr.bf16.mxu0 0
        %2414 = vmatmul.mubr.bf16.gmra.mxu0 %v1032
        %v2415 = vpop.f32.mrf.mxu0
        %v2416 = vadd.f32 0.0, %v2415
        %v2417 = vpop.f32.mrf.mxu0
        %v2418 = vpop.f32.mrf.mxu0
        %v2419 = vadd.f32 0.0, %v2418
        %v2420 = vpop.f32.mrf.mxu0
        %2421 = vmatprep.mubr.bf16.mxu0 0
        %2422 = vmatmul.mubr.bf16.gmra.mxu0 %v1035
        %v2423 = vpop.f32.mrf.mxu0
        %v2424 = vadd.f32 0.0, %v2423
        %v2425 = vpop.f32.mrf.mxu0
        %v2426 = vpop.f32.mrf.mxu0
        %v2427 = vadd.f32 0.0, %v2426
        %v2428 = vpop.f32.mrf.mxu0
        %2429 = vmatprep.mubr.bf16.mxu0 0
        %2430 = vmatmul.mubr.bf16.gmra.mxu0 %v1038
        %v2431 = vpop.f32.mrf.mxu0
        %v2432 = vadd.f32 0.0, %v2431
        %v2433 = vpop.f32.mrf.mxu0
        %v2434 = vpop.f32.mrf.mxu0
        %v2435 = vadd.f32 0.0, %v2434
        %v2436 = vpop.f32.mrf.mxu0
        %2437 = vmatprep.mubr.bf16.mxu0 0
        %2438 = vmatmul.mubr.bf16.gmra.mxu0 %v1041
        %v2439 = vpop.f32.mrf.mxu0
        %v2440 = vadd.f32 0.0, %v2439
        %v2441 = vpop.f32.mrf.mxu0
        %v2442 = vpop.f32.mrf.mxu0
        %v2443 = vadd.f32 0.0, %v2442
        %v2444 = vpop.f32.mrf.mxu0
        %2445 = vmatprep.mubr.bf16.mxu0 0
        %2446 = vmatmul.mubr.bf16.gmra.mxu0 %v1044
        %v2447 = vpop.f32.mrf.mxu0
        %v2448 = vadd.f32 0.0, %v2447
        %v2449 = vpop.f32.mrf.mxu0
        %v2450 = vpop.f32.mrf.mxu0
        %v2451 = vadd.f32 0.0, %v2450
        %v2452 = vpop.f32.mrf.mxu0
        %2453 = vmatprep.mubr.bf16.mxu0 0
        %2454 = vmatmul.mubr.bf16.gmra.mxu0 %v1047
        %v2455 = vpop.f32.mrf.mxu0
        %v2456 = vadd.f32 0.0, %v2455
        %v2457 = vpop.f32.mrf.mxu0
        %v2458 = vpop.f32.mrf.mxu0
        %v2459 = vadd.f32 0.0, %v2458
        %v2460 = vpop.f32.mrf.mxu0
        %2461 = vmatprep.mubr.bf16.mxu0 0
        %2462 = vmatmul.mubr.bf16.gmra.mxu0 %v1050
        %v2463 = vpop.f32.mrf.mxu0
        %v2464 = vadd.f32 0.0, %v2463
        %v2465 = vpop.f32.mrf.mxu0
        %v2466 = vpop.f32.mrf.mxu0
        %v2467 = vadd.f32 0.0, %v2466
        %v2468 = vpop.f32.mrf.mxu0
        %2469 = vmatprep.mubr.bf16.mxu0 0
        %2470 = vmatmul.mubr.bf16.gmra.mxu0 %v1685
        %v2471 = vpop.f32.mrf.mxu0
        %v2472 = vadd.f32 0.0, %v2471
        %v2473 = vpop.f32.mrf.mxu0
        %v2474 = vpop.f32.mrf.mxu0
        %v2475 = vadd.f32 0.0, %v2474
        %v2476 = vpop.f32.mrf.mxu0
        %2477 = vmatprep.mubr.bf16.mxu0 0
        %2478 = vmatmul.mubr.bf16.gmra.mxu0 %v2320
        %v2479 = vpop.f32.mrf.mxu0
        %v2480 = vadd.f32 0.0, %v2479
        %v2481 = vpop.f32.mrf.mxu0
        %v2482 = vpop.f32.mrf.mxu0
        %v2483 = vadd.f32 0.0, %v2482
        %v2484 = vpop.f32.mrf.mxu0
        %2485 = vdwg.mxu0
        %v2486 = vadd.f32 %v2271, %v2360
        %v2487 = vadd.f32 %v2272, %v2363
        %v2488 = vadd.f32 %v2273, %v2368
        %v2489 = vadd.f32 %v2274, %v2371
        %v2490 = vadd.f32 %v2275, %v2376
        %v2491 = vadd.f32 %v2276, %v2379
        %v2492 = vadd.f32 %v2277, %v2384
        %v2493 = vadd.f32 %v2278, %v2387
        %v2494 = vadd.f32 %v2279, %v2392
        %v2495 = vadd.f32 %v2280, %v2395
        %v2496 = vadd.f32 %v2281, %v2400
        %v2497 = vadd.f32 %v2282, %v2403
        %v2498 = vadd.f32 %v2283, %v2408
        %v2499 = vadd.f32 %v2284, %v2411
        %v2500 = vadd.f32 %v2285, %v2416
        %v2501 = vadd.f32 %v2286, %v2419
        %v2502 = vadd.f32 %v2287, %v2424
        %v2503 = vadd.f32 %v2288, %v2427
        %v2504 = vadd.f32 %v2289, %v2432
        %v2505 = vadd.f32 %v2290, %v2435
        %v2506 = vadd.f32 %v2291, %v2440
        %v2507 = vadd.f32 %v2292, %v2443
        %v2508 = vadd.f32 %v2293, %v2448
        %v2509 = vadd.f32 %v2294, %v2451
        %v2510 = vadd.f32 %v2295, %v2456
        %v2511 = vadd.f32 %v2296, %v2459
        %v2512 = vadd.f32 %v2297, %v2464
        %v2513 = vadd.f32 %v2298, %v2467
        %v2514 = vadd.f32 %v2299, %v2472
        %v2515 = vadd.f32 %v2300, %v2475
        %v2516 = vadd.f32 %v2301, %v2480
        %v2517 = vadd.f32 %v2302, %v2483
        %v2518 = vld [vmem:[%s2] sm:$0x1]
        %v2520 = vlaneseq
        %v2521 = vshrl.u32 %v2520, 7
        %v2522 = vsub.s32 0, %v2521
        %v2523 = vrot.slane %v2518, %v2522
        %v2525 = vadd.f32 %v2486, %v2523
        %v2526 = vadd.f32 %v2487, %v2523
        %v2527 = vadd.f32 %v2488, %v2523
        %v2528 = vadd.f32 %v2489, %v2523
        %v2529 = vadd.f32 %v2490, %v2523
        %v2530 = vadd.f32 %v2491, %v2523
        %v2531 = vadd.f32 %v2492, %v2523
        %v2532 = vadd.f32 %v2493, %v2523
        %v2533 = vadd.f32 %v2494, %v2523
        %v2534 = vadd.f32 %v2495, %v2523
        %v2535 = vadd.f32 %v2496, %v2523
        %v2536 = vadd.f32 %v2497, %v2523
        %v2537 = vadd.f32 %v2498, %v2523
        %v2538 = vadd.f32 %v2499, %v2523
        %v2539 = vadd.f32 %v2500, %v2523
        %v2540 = vadd.f32 %v2501, %v2523
        %v2541 = vadd.f32 %v2502, %v2523
        %v2542 = vadd.f32 %v2503, %v2523
        %v2543 = vadd.f32 %v2504, %v2523
        %v2544 = vadd.f32 %v2505, %v2523
        %v2545 = vadd.f32 %v2506, %v2523
        %v2546 = vadd.f32 %v2507, %v2523
        %v2547 = vadd.f32 %v2508, %v2523
        %v2548 = vadd.f32 %v2509, %v2523
        %v2549 = vadd.f32 %v2510, %v2523
        %v2550 = vadd.f32 %v2511, %v2523
        %v2551 = vadd.f32 %v2512, %v2523
        %v2552 = vadd.f32 %v2513, %v2523
        %v2553 = vadd.f32 %v2514, %v2523
        %v2554 = vadd.f32 %v2515, %v2523
        %v2555 = vadd.f32 %v2516, %v2523
        %v2556 = vadd.f32 %v2517, %v2523
        %v2557 = vmax.f32 %v2525, 0.0
        %v2558 = vmax.f32 %v2526, 0.0
        %v2559 = vmax.f32 %v2527, 0.0
        %v2560 = vmax.f32 %v2528, 0.0
        %v2561 = vmax.f32 %v2529, 0.0
        %v2562 = vmax.f32 %v2530, 0.0
        %v2563 = vmax.f32 %v2531, 0.0
        %v2564 = vmax.f32 %v2532, 0.0
        %v2565 = vmax.f32 %v2533, 0.0
        %v2566 = vmax.f32 %v2534, 0.0
        %v2567 = vmax.f32 %v2535, 0.0
        %v2568 = vmax.f32 %v2536, 0.0
        %v2569 = vmax.f32 %v2537, 0.0
        %v2570 = vmax.f32 %v2538, 0.0
        %v2571 = vmax.f32 %v2539, 0.0
        %v2572 = vmax.f32 %v2540, 0.0
        %v2573 = vmax.f32 %v2541, 0.0
        %v2574 = vmax.f32 %v2542, 0.0
        %v2575 = vmax.f32 %v2543, 0.0
        %v2576 = vmax.f32 %v2544, 0.0
        %v2577 = vmax.f32 %v2545, 0.0
        %v2578 = vmax.f32 %v2546, 0.0
        %v2579 = vmax.f32 %v2547, 0.0
        %v2580 = vmax.f32 %v2548, 0.0
        %v2581 = vmax.f32 %v2549, 0.0
        %v2582 = vmax.f32 %v2550, 0.0
        %v2583 = vmax.f32 %v2551, 0.0
        %v2584 = vmax.f32 %v2552, 0.0
        %v2585 = vmax.f32 %v2553, 0.0
        %v2586 = vmax.f32 %v2554, 0.0
        %v2587 = vmax.f32 %v2555, 0.0
        %v2588 = vmax.f32 %v2556, 0.0
        %vm2589 = vcmask 523264
        %2590 = vst.msk [vmem:[%s177] sm:$0xff] %vm2589, %v2557
        %2591 = vst.msk [vmem:[%s177 + $0x8] sm:$0xff] %vm2589, %v2558
        %2592 = vst.msk [vmem:[%s177 + $0x10] sm:$0xff] %vm2589, %v2559
        %2593 = vst.msk [vmem:[%s177 + $0x18] sm:$0xff] %vm2589, %v2560
        %2594 = vst.msk [vmem:[%s177 + $0x20] sm:$0xff] %vm2589, %v2561
        %2595 = vst.msk [vmem:[%s177 + $0x28] sm:$0xff] %vm2589, %v2562
        %2596 = vst.msk [vmem:[%s177 + $0x30] sm:$0xff] %vm2589, %v2563
        %2597 = vst.msk [vmem:[%s177 + $0x38] sm:$0xff] %vm2589, %v2564
        %2598 = vst.msk [vmem:[%s177 + $0x40] sm:$0xff] %vm2589, %v2565
        %2599 = vst.msk [vmem:[%s177 + $0x48] sm:$0xff] %vm2589, %v2566
        %2600 = vst.msk [vmem:[%s177 + $0x50] sm:$0xff] %vm2589, %v2567
        %2601 = vst.msk [vmem:[%s177 + $0x58] sm:$0xff] %vm2589, %v2568
        %2602 = vst.msk [vmem:[%s177 + $0x60] sm:$0xff] %vm2589, %v2569
        %2603 = vst.msk [vmem:[%s177 + $0x68] sm:$0xff] %vm2589, %v2570
        %2604 = vst.msk [vmem:[%s177 + $0x70] sm:$0xff] %vm2589, %v2571
        %2605 = vst.msk [vmem:[%s177 + $0x78] sm:$0xff] %vm2589, %v2572
        %2606 = vst.msk [vmem:[%s177 + $0x80] sm:$0xff] %vm2589, %v2573
        %2607 = vst.msk [vmem:[%s177 + $0x88] sm:$0xff] %vm2589, %v2574
        %2608 = vst.msk [vmem:[%s177 + $0x90] sm:$0xff] %vm2589, %v2575
        %2609 = vst.msk [vmem:[%s177 + $0x98] sm:$0xff] %vm2589, %v2576
        %2610 = vst.msk [vmem:[%s177 + $0xa0] sm:$0xff] %vm2589, %v2577
        %2611 = vst.msk [vmem:[%s177 + $0xa8] sm:$0xff] %vm2589, %v2578
        %2612 = vst.msk [vmem:[%s177 + $0xb0] sm:$0xff] %vm2589, %v2579
        %2613 = vst.msk [vmem:[%s177 + $0xb8] sm:$0xff] %vm2589, %v2580
        %2614 = vst.msk [vmem:[%s177 + $0xc0] sm:$0xff] %vm2589, %v2581
        %2615 = vst.msk [vmem:[%s177 + $0xc8] sm:$0xff] %vm2589, %v2582
        %2616 = vst.msk [vmem:[%s177 + $0xd0] sm:$0xff] %vm2589, %v2583
        %2617 = vst.msk [vmem:[%s177 + $0xd8] sm:$0xff] %vm2589, %v2584
        %2618 = vst.msk [vmem:[%s177 + $0xe0] sm:$0xff] %vm2589, %v2585
        %2619 = vst.msk [vmem:[%s177 + $0xe8] sm:$0xff] %vm2589, %v2586
        %2620 = vst.msk [vmem:[%s177 + $0xf0] sm:$0xff] %vm2589, %v2587
        %2621 = vst.msk [vmem:[%s177 + $0xf8] sm:$0xff] %vm2589, %v2588
        %s2622 = sand.u32 %s107, 1
        %s2623 = scalar_lea.sflag [#allocation3], %s2622
        %s2624 = sand.u32 %s107, 1
        %s2625 = smul.addr %s2624, 256
        %s2626 = scalar_lea.vmem [#allocation2], %s2625
        // Predicated region
        $region33: #{tpu_custom_call.1} parent=31 // pred_check
          %p2627 = pneg %p117
        $region34: #{tpu_custom_call.1} parent=31 // pred_check_branch
          %2629 = sbr.rel (%p2627) target = $region36
        $region35: #{tpu_custom_call.1} parent=31 // pred_region
          %s2630 = smul.u32 16, %s22
          %s2632 = ssub.s32 4096, 4096
          %2633 = vsyncadd %s2623, %s2632
          %s2634 = smul.addr %s2630, 2
          %s2635 = smul.addr %s21, 32
          %s2636 = sadd.s32 %s2634, %s2635
          %s2637 = smul.addr %s2636, 128
          %s2638 = scalar_lea.hbm %s3, %s2637
          %s2639 = sshll.u32 %s2626, 4
          %s2640 = int_to_ptr.vmem [resolvable:$true] %s2639
          %2645 = dma.vmem_to_hbm [thread:$0]  %s2640, 4096, %s2638, %s2623, 128, 128, 8
        $region36: #{tpu_custom_call.1} parent=31 // pred_fallthru
          _
      $region32: #{tpu_custom_call.1} parent=5 // pred_fallthru
        _
      %p2646 = scmp.le.s32.totalorder 2, %s12
      // Predicated region
      $region37: #{tpu_custom_call.1} parent=5 // pred_check
        %p2647 = pneg %p2646
      $region38: #{tpu_custom_call.1} parent=5 // pred_check_branch
        %2649 = sbr.rel (%p2647) target = $region40
      $region39: #{tpu_custom_call.1} parent=5 // pred_region
        %s2650 = ssub.s32 %s12, 2
        // Predicated region
        $region41: #{tpu_custom_call.1} parent=39 // pred_check
          %p2651 = pneg %p123
        $region42: #{tpu_custom_call.1} parent=39 // pred_check_branch
          %2653 = sbr.rel (%p2651) target = $region44
        $region43: #{tpu_custom_call.1} parent=39 // pred_region
          %s2654 = sand.u32 %s108, 1
          %s2655 = scalar_lea.sflag [#allocation3], %s2654
          %s2656 = sand.u32 %s108, 1
          %s2657 = smul.addr %s2656, 256
          %s2658 = scalar_lea.vmem [#allocation2], %s2657
          %2659 = dma.done %s2655, 4096
        $region44: #{tpu_custom_call.1} parent=39 // pred_fallthru
          _
      $region40: #{tpu_custom_call.1} parent=5 // pred_fallthru
        _
    $region6: #{tpu_custom_call.1} parent=1 // loop_footer
      %s16 = sadd.s32 1, %s12
    $region7: #{tpu_custom_call.1} parent=1 // loop_footer_branch
      %11 = sbr.rel target = $region3
    $region8: #{tpu_custom_call.1} parent=1 // loop_exit
      _
    %2660 = vsyncpa [#allocation3], 1
    %s2661 = scalar_lea.sflag [#allocation3], 1
    %2662 = vsyncpa %s2661, 1

</llo_original>
